<compile_context>
chip_gen: v7x
topology: tpu7x:2x2x1
jax: 0.10.0
libtpu: 0.0.40
codegen_flags: <defaults>
</compile_context>

<pallas_src>
import jax
import jax.numpy as jnp
import numpy as np
from jax import lax
from jax.experimental import pallas as pl
from jax.experimental.pallas import tpu as pltpu


def _gfe_kernel(x_ref, top_ref, bot_ref, dw_ref, pw_ref, shift_ref, o_ref,
                slab_ref):
    """One (batch, row-tile) grid step.

    x_ref    : (1, TH, W, C)  input rows [t*TH, (t+1)*TH)            (NHWC)
    top_ref  : (1, 1,  W, C)  input row  t*TH - 1 (clamped; zeroed when t == 0)
    bot_ref  : (1, 1,  W, C)  input row  (t+1)*TH (clamped; zeroed when last t)
    dw_ref   : (3, 3, C)      depthwise weights (f32)
    pw_ref   : (C, C)         pointwise weights [c_in, c_out], BN scale folded
    shift_ref: (1, C)         folded BN shift = beta - mean * scale   (f32)
    o_ref    : (1, TH, W, C)  output tile
    slab_ref : (TH+2, W, C)   f32 VMEM scratch: [top halo; band; bottom halo]
    """
    _, TH, W, C = o_ref.shape
    t = pl.program_id(1)
    last_t = pl.num_programs(1) - 1

    # ---- Stage the band + halo rows into the f32 slab (no concatenate). ------
    slab_ref[pl.ds(1, TH)] = x_ref[0].astype(jnp.float32)
    top_keep = (t > 0).astype(jnp.float32)        # zero-pad above image row 0
    bot_keep = (t < last_t).astype(jnp.float32)   # zero-pad below image row H-1
    slab_ref[0] = top_ref[0, 0].astype(jnp.float32) * top_keep
    slab_ref[TH + 1] = bot_ref[0, 0].astype(jnp.float32) * bot_keep

    # ---- Depthwise 3x3 (VPU): accumulate over kh first, all row-aligned. -----
    a0 = jnp.zeros((TH, W, C), jnp.float32)   # kw = 0 (left tap)
    a1 = jnp.zeros((TH, W, C), jnp.float32)   # kw = 1 (centre tap)
    a2 = jnp.zeros((TH, W, C), jnp.float32)   # kw = 2 (right tap)
    for kh in range(3):
        band = slab_ref[pl.ds(kh, TH)]        # (TH, W, C) aligned leading slice
        a0 = a0 + band * dw_ref[kh, 0]
        a1 = a1 + band * dw_ref[kh, 1]
        a2 = a2 + band * dw_ref[kh, 2]

    # Column shifts: out[w] = a0[w-1] + a1[w] + a2[w+1], zero at the borders.
    # Only 2 shifted ops remain (was 9 misaligned slices).
    # TODO(synk): pltpu.roll(axis=1) + iota mask would move these onto the XLU.
    zero_col = jnp.zeros((TH, 1, C), jnp.float32)
    left = jnp.concatenate([zero_col, a0[:, :W - 1, :]], axis=1)
    right = jnp.concatenate([a2[:, 1:, :], zero_col], axis=1)
    acc = left + a1 + right                   # (TH, W, C) depthwise output, f32

    # ---- Pointwise 1x1 on the MXU (BN scale already folded into pw). ---------
    # Flatten is layout-free when W % 8 == 0; lhs matches pw dtype (bf16 when
    # the wrapper chose single-pass MXU, f32 otherwise).
    lhs = acc.reshape(TH * W, C).astype(pw_ref.dtype)
    y = jnp.dot(lhs, pw_ref[...], preferred_element_type=jnp.float32)
    y = y.reshape(TH, W, C) + shift_ref[0]

    # ---- Residual (slab interior = original input rows) + ReLU. --------------
    res = slab_ref[pl.ds(1, TH)]
    o_ref[...] = jnp.maximum(y + res, 0.0)[None].astype(o_ref.dtype)


def _vmem_capacity_bytes():
    try:
        return int(pltpu.get_tpu_info().vmem_capacity_bytes)
    except Exception:
        return 64 * 1024 * 1024        # v7x-safe fallback


def _pick_block_h(H, W, C, itemsize, budget_bytes):
    """Largest divisor of H whose per-step live VMEM stays under budget_bytes.

    Per output row (bytes): double-buffered in/out blocks (4 * itemsize) +
    the f32 slab scratch (4) + ~6 live f32 temporaries (a0..a2, shifted adds,
    acc / lhs / y) -> ~24.  Deliberately conservative so a TH derived on a
    128 MiB-VMEM chip (v5e/v6e) never overflows v7x's 64 MiB.
    """
    per_row = W * C * (4 * itemsize + 28)
    th = int(max(1, min(H, budget_bytes // max(per_row, 1))))
    while H % th:
        th -= 1
    return th


def global_feature_enhancement_nhwc(x, dw, pw, gamma, beta, run_mean, run_var,
                                     eps=1e-5, block_h=None):
    """x: (N, H, W, C). Returns (N, H, W, C). Inference-form BatchNorm."""
    N, H, W, C = x.shape
    itemsize = jnp.dtype(x.dtype).itemsize

    # Conv + BN fusion in f32; cast the folded weights once.  bf16 weights only
    # when C is large enough for a single-pass MXU matmul to matter.
    scale = gamma.astype(jnp.float32) / jnp.sqrt(run_var.astype(jnp.float32) + eps)
    mm_dtype = jnp.bfloat16 if C >= 128 else jnp.float32
    pw_folded = (pw.astype(jnp.float32) * scale[None, :]).astype(mm_dtype)
    shift = (beta.astype(jnp.float32)
             - run_mean.astype(jnp.float32) * scale).reshape(1, C)
    dw_f32 = dw.astype(jnp.float32)

    # VMEM-aware row tiling: ~96 MiB scoped limit on 128 MiB parts (v5e/v6e),
    # ~48 MiB on v7x (64 MiB physical); tile budget = half the limit.
    vmem_limit = int(min(_vmem_capacity_bytes() * 3 // 4, 100 * 1024 * 1024))
    if block_h is not None:
        TH = int(block_h)
    else:
        TH = _pick_block_h(H, W, C, itemsize, vmem_limit // 2)
        if N * (H // TH) < 2:          # keep both v7x TensorCores busy
            divs = [d for d in range(1, H + 1) if H % d == 0 and H // d >= 2]
            if divs:
                TH = max(divs)
    assert H % TH == 0, f"block_h={TH} must divide H={H}"
    nH = H // TH

    return pl.pallas_call(
        _gfe_kernel,
        out_shape=jax.ShapeDtypeStruct((N, H, W, C), x.dtype),
        grid=(N, nH),
        in_specs=[
            # main row band: rows [t*TH, (t+1)*TH)
            pl.BlockSpec((1, TH, W, C), lambda n, t: (n, t, 0, 0)),
            # 1-row halos above/below the band (block size 1 along H, so the
            # index map value is a row index; clamped at the image border where
            # the kernel zeroes the halo anyway).
            pl.BlockSpec((1, 1, W, C),
                         lambda n, t: (n, jnp.maximum(t * TH - 1, 0), 0, 0)),
            pl.BlockSpec((1, 1, W, C),
                         lambda n, t: (n, jnp.minimum(t * TH + TH, H - 1), 0, 0)),
            pl.BlockSpec((3, 3, C), lambda n, t: (0, 0, 0)),
            pl.BlockSpec((C, C), lambda n, t: (0, 0)),
            pl.BlockSpec((1, C), lambda n, t: (0, 0)),
        ],
        out_specs=pl.BlockSpec((1, TH, W, C), lambda n, t: (n, t, 0, 0)),
        scratch_shapes=[pltpu.VMEM((TH + 2, W, C), jnp.float32)],
        compiler_params=pltpu.CompilerParams(
            dimension_semantics=("parallel", "parallel"),
            vmem_limit_bytes=vmem_limit,
        ),
    )(x, x, x, dw_f32, pw_folded, shift)


def global_feature_enhancement(x_nchw, dw, pw, gamma, beta, run_mean, run_var,
                               eps=1e-5, block_h=None):
    """NCHW adapter matching the PyTorch module's (N, C, H, W) interface."""
    # TODO(synk): these two transposes are the only remaining wrapper-side HBM
    # passes; an NHWC surrounding graph should call the _nhwc entry point.
    x = jnp.transpose(x_nchw, (0, 2, 3, 1))
    y = global_feature_enhancement_nhwc(x, dw, pw, gamma, beta, run_mean,
                                        run_var, eps=eps, block_h=block_h)
    return jnp.transpose(y, (0, 3, 1, 2))


def _reference(x_nchw, dw, pw, gamma, beta, run_mean, run_var, eps=1e-5):
    """Pure-JAX reference (lax conv) for correctness checking."""
    x = jnp.transpose(x_nchw, (0, 2, 3, 1))                  # NHWC
    C = x.shape[-1]
    dw_hwio = dw.reshape(3, 3, 1, C)
    y = lax.conv_general_dilated(
        x, dw_hwio, window_strides=(1, 1), padding=((1, 1), (1, 1)),
        dimension_numbers=("NHWC", "HWIO", "NHWC"), feature_group_count=C)
    y = jnp.einsum("nhwc,cd->nhwd", y, pw)                   # pointwise 1x1
    scale = gamma / jnp.sqrt(run_var + eps)
    shift = beta - run_mean * scale
    y = y * scale + shift
    y = jnp.maximum(y + x, 0.0)
    return jnp.transpose(y, (0, 3, 1, 2))


if __name__ == "__main__":
    def make_inputs(key, N, C, H, W, w_scale=0.2, p_scale=0.3):
        kx, kdw, kpw, kg, kb, km, kv = jax.random.split(key, 7)
        x = jax.random.normal(kx, (N, C, H, W), jnp.float32)
        # PyTorch depthwise weight is (C,1,3,3); stored here as (3,3,C).
        dw = jax.random.normal(kdw, (3, 3, C), jnp.float32) * w_scale
        # PyTorch pointwise weight is (C_out,C_in,1,1); stored here as (C_in,C_out).
        pw = jax.random.normal(kpw, (C, C), jnp.float32) * p_scale
        gamma = 1.0 + 0.1 * jax.random.normal(kg, (C,), jnp.float32)
        beta = 0.1 * jax.random.normal(kb, (C,), jnp.float32)
        run_mean = 0.1 * jax.random.normal(km, (C,), jnp.float32)
        run_var = 1.0 + 0.1 * jax.random.uniform(kv, (C,), jnp.float32)
        return x, dw, pw, gamma, beta, run_mean, run_var

    # Tolerance note: both the Pallas kernel and the XLA reference may execute
    # f32 contractions as bf16 MXU passes, so compare at ~1e-2.
    tol = dict(rtol=2e-2, atol=2e-2)

    # Primary small test: N=2, C=4, H=W=16 (single row tile per image).
    args = make_inputs(jax.random.PRNGKey(0), 2, 4, 16, 16)
    out = jax.block_until_ready(global_feature_enhancement(*args))
    ref = _reference(*args)
    np.testing.assert_allclose(np.asarray(out), np.asarray(ref), **tol)

    # Exercise the row tiling + halo handling explicitly (nH = 4).
    out2 = jax.block_until_ready(global_feature_enhancement(*args, block_h=4))
    np.testing.assert_allclose(np.asarray(out2), np.asarray(ref), **tol)

    # Exercise the bf16 single-pass MXU pointwise path (C >= 128) and the
    # automatic >=2-grid-steps (megacore) split for N=1.
    args3 = make_inputs(jax.random.PRNGKey(1), 1, 128, 16, 16,
                        w_scale=0.1, p_scale=0.05)
    out3 = jax.block_until_ready(global_feature_enhancement(*args3))
    ref3 = _reference(*args3)
    np.testing.assert_allclose(np.asarray(out3), np.asarray(ref3), **tol)

    print("KERNEL_OK")
</pallas_src>

<mosaic_0001>
module attributes {stable_mosaic.version = 11 : i64} {
  func.func @_gfe_kernel(%arg0: i32, %arg1: i32, %arg2: memref<1x16x16x4xf32, #tpu.memory_space<vmem>>, %arg3: memref<1x1x16x4xf32, #tpu.memory_space<vmem>>, %arg4: memref<1x1x16x4xf32, #tpu.memory_space<vmem>>, %arg5: memref<3x3x4xf32, #tpu.memory_space<vmem>>, %arg6: memref<4x4xf32, #tpu.memory_space<vmem>>, %arg7: memref<1x4xf32, #tpu.memory_space<vmem>>, %arg8: memref<1x16x16x4xf32, #tpu.memory_space<vmem>>, %arg9: memref<18x16x4xf32, #tpu.memory_space<vmem>>) attributes {dimension_semantics = [#tpu.dimension_semantics<parallel>, #tpu.dimension_semantics<parallel>], iteration_bounds = array<i64: 2, 1>, scalar_prefetch = 0 : i64, scratch_operands = 1 : i64, tpu.core_type = #tpu.core_type<tc>, window_params = [{transform_indices = @transform_0, window_bounds = array<i64: 1, 16, 16, 4>}, {transform_indices = @transform_1, window_bounds = array<i64: 1, 1, 16, 4>}, {transform_indices = @transform_2, window_bounds = array<i64: 1, 1, 16, 4>}, {pipeline_mode = #tpu.pipeline_mode<synchronous>, transform_indices = @transform_3, window_bounds = array<i64: 3, 3, 4>}, {pipeline_mode = #tpu.pipeline_mode<synchronous>, transform_indices = @transform_4, window_bounds = array<i64: 4, 4>}, {pipeline_mode = #tpu.pipeline_mode<synchronous>, transform_indices = @transform_5, window_bounds = array<i64: 1, 4>}, {transform_indices = @transform_6, window_bounds = array<i64: 1, 16, 16, 4>}]} {
    %c0 = arith.constant 0 : index
    %c0_0 = arith.constant 0 : index
    %c0_1 = arith.constant 0 : index
    %c0_2 = arith.constant 0 : index
    %0 = vector.load %arg2[%c0, %c0_0, %c0_1, %c0_2] : memref<1x16x16x4xf32, #tpu.memory_space<vmem>>, vector<1x16x16x4xf32>
    %1 = vector.shape_cast %0 : vector<1x16x16x4xf32> to vector<16x16x4xf32>
    %c1 = arith.constant 1 : index
    %c0_3 = arith.constant 0 : index
    %c0_4 = arith.constant 0 : index
    %2 = vector.load %arg9[%c1, %c0_3, %c0_4] : memref<18x16x4xf32, #tpu.memory_space<vmem>>, vector<16x16x4xf32>
    tpu.vector_store %arg9[%c1, %c0_3, %c0_4], %1 {strides = array<i32>} : memref<18x16x4xf32, #tpu.memory_space<vmem>>, vector<16x16x4xf32>,
    %c0_i32 = arith.constant 0 : i32
    %3 = arith.cmpi sgt, %arg1, %c0_i32 : i32
    %4 = arith.extui %3 : i1 to i32
    %5 = arith.sitofp %4 : i32 to f32
    %c0_i32_5 = arith.constant 0 : i32
    %6 = arith.cmpi slt, %arg1, %c0_i32_5 : i32
    %7 = arith.extui %6 : i1 to i32
    %8 = arith.sitofp %7 : i32 to f32
    %c0_6 = arith.constant 0 : index
    %c0_7 = arith.constant 0 : index
    %c0_8 = arith.constant 0 : index
    %c0_9 = arith.constant 0 : index
    %9 = vector.load %arg3[%c0_6, %c0_7, %c0_8, %c0_9] : memref<1x1x16x4xf32, #tpu.memory_space<vmem>>, vector<1x1x16x4xf32>
    %10 = vector.shape_cast %9 : vector<1x1x16x4xf32> to vector<16x4xf32>
    %11 = vector.broadcast %5 : f32 to vector<16x4xf32>
    %12 = arith.mulf %10, %11 : vector<16x4xf32>
    %c0_10 = arith.constant 0 : index
    %c0_11 = arith.constant 0 : index
    %c0_12 = arith.constant 0 : index
    %13 = vector.load %arg9[%c0_10, %c0_11, %c0_12] : memref<18x16x4xf32, #tpu.memory_space<vmem>>, vector<1x16x4xf32>
    %14 = vector.shape_cast %13 : vector<1x16x4xf32> to vector<16x4xf32>
    %15 = vector.shape_cast %12 : vector<16x4xf32> to vector<1x16x4xf32>
    tpu.vector_store %arg9[%c0_10, %c0_11, %c0_12], %15 {strides = array<i32>} : memref<18x16x4xf32, #tpu.memory_space<vmem>>, vector<1x16x4xf32>,
    %c0_13 = arith.constant 0 : index
    %c0_14 = arith.constant 0 : index
    %c0_15 = arith.constant 0 : index
    %c0_16 = arith.constant 0 : index
    %16 = vector.load %arg4[%c0_13, %c0_14, %c0_15, %c0_16] : memref<1x1x16x4xf32, #tpu.memory_space<vmem>>, vector<1x1x16x4xf32>
    %17 = vector.shape_cast %16 : vector<1x1x16x4xf32> to vector<16x4xf32>
    %18 = vector.broadcast %8 : f32 to vector<16x4xf32>
    %19 = arith.mulf %17, %18 : vector<16x4xf32>
    %c17 = arith.constant 17 : index
    %c0_17 = arith.constant 0 : index
    %c0_18 = arith.constant 0 : index
    %20 = vector.load %arg9[%c17, %c0_17, %c0_18] : memref<18x16x4xf32, #tpu.memory_space<vmem>>, vector<1x16x4xf32>
    %21 = vector.shape_cast %20 : vector<1x16x4xf32> to vector<16x4xf32>
    %22 = vector.shape_cast %19 : vector<16x4xf32> to vector<1x16x4xf32>
    tpu.vector_store %arg9[%c17, %c0_17, %c0_18], %22 {strides = array<i32>} : memref<18x16x4xf32, #tpu.memory_space<vmem>>, vector<1x16x4xf32>,
    %cst = arith.constant 0.000000e+00 : f32
    %23 = vector.broadcast %cst : f32 to vector<16x16x4xf32>
    %cst_19 = arith.constant 0.000000e+00 : f32
    %24 = vector.broadcast %cst_19 : f32 to vector<16x16x4xf32>
    %cst_20 = arith.constant 0.000000e+00 : f32
    %25 = vector.broadcast %cst_20 : f32 to vector<16x16x4xf32>
    %c0_21 = arith.constant 0 : index
    %c0_22 = arith.constant 0 : index
    %c0_23 = arith.constant 0 : index
    %26 = vector.load %arg9[%c0_21, %c0_22, %c0_23] : memref<18x16x4xf32, #tpu.memory_space<vmem>>, vector<16x16x4xf32>
    %c0_24 = arith.constant 0 : index
    %c0_25 = arith.constant 0 : index
    %c0_26 = arith.constant 0 : index
    %27 = vector.load %arg5[%c0_24, %c0_25, %c0_26] : memref<3x3x4xf32, #tpu.memory_space<vmem>>, vector<1x1x4xf32>
    %28 = vector.shape_cast %27 : vector<1x1x4xf32> to vector<4xf32>
    %29 = vector.shape_cast %28 : vector<4xf32> to vector<1x1x4xf32>
    %30 = vector.broadcast %29 : vector<1x1x4xf32> to vector<16x16x4xf32>
    %31 = arith.mulf %26, %30 : vector<16x16x4xf32>
    %32 = arith.addf %23, %31 : vector<16x16x4xf32>
    %c0_27 = arith.constant 0 : index
    %c1_28 = arith.constant 1 : index
    %c0_29 = arith.constant 0 : index
    %33 = vector.load %arg5[%c0_27, %c1_28, %c0_29] : memref<3x3x4xf32, #tpu.memory_space<vmem>>, vector<1x1x4xf32>
    %34 = vector.shape_cast %33 : vector<1x1x4xf32> to vector<4xf32>
    %35 = vector.shape_cast %34 : vector<4xf32> to vector<1x1x4xf32>
    %36 = vector.broadcast %35 : vector<1x1x4xf32> to vector<16x16x4xf32>
    %37 = arith.mulf %26, %36 : vector<16x16x4xf32>
    %38 = arith.addf %24, %37 : vector<16x16x4xf32>
    %c0_30 = arith.constant 0 : index
    %c2 = arith.constant 2 : index
    %c0_31 = arith.constant 0 : index
    %39 = vector.load %arg5[%c0_30, %c2, %c0_31] : memref<3x3x4xf32, #tpu.memory_space<vmem>>, vector<1x1x4xf32>
    %40 = vector.shape_cast %39 : vector<1x1x4xf32> to vector<4xf32>
    %41 = vector.shape_cast %40 : vector<4xf32> to vector<1x1x4xf32>
    %42 = vector.broadcast %41 : vector<1x1x4xf32> to vector<16x16x4xf32>
    %43 = arith.mulf %26, %42 : vector<16x16x4xf32>
    %44 = arith.addf %25, %43 : vector<16x16x4xf32>
    %c1_32 = arith.constant 1 : index
    %c0_33 = arith.constant 0 : index
    %c0_34 = arith.constant 0 : index
    %45 = vector.load %arg9[%c1_32, %c0_33, %c0_34] : memref<18x16x4xf32, #tpu.memory_space<vmem>>, vector<16x16x4xf32>
    %c1_35 = arith.constant 1 : index
    %c0_36 = arith.constant 0 : index
    %c0_37 = arith.constant 0 : index
    %46 = vector.load %arg5[%c1_35, %c0_36, %c0_37] : memref<3x3x4xf32, #tpu.memory_space<vmem>>, vector<1x1x4xf32>
    %47 = vector.shape_cast %46 : vector<1x1x4xf32> to vector<4xf32>
    %48 = vector.shape_cast %47 : vector<4xf32> to vector<1x1x4xf32>
    %49 = vector.broadcast %48 : vector<1x1x4xf32> to vector<16x16x4xf32>
    %50 = arith.mulf %45, %49 : vector<16x16x4xf32>
    %51 = arith.addf %32, %50 : vector<16x16x4xf32>
    %c1_38 = arith.constant 1 : index
    %c1_39 = arith.constant 1 : index
    %c0_40 = arith.constant 0 : index
    %52 = vector.load %arg5[%c1_38, %c1_39, %c0_40] : memref<3x3x4xf32, #tpu.memory_space<vmem>>, vector<1x1x4xf32>
    %53 = vector.shape_cast %52 : vector<1x1x4xf32> to vector<4xf32>
    %54 = vector.shape_cast %53 : vector<4xf32> to vector<1x1x4xf32>
    %55 = vector.broadcast %54 : vector<1x1x4xf32> to vector<16x16x4xf32>
    %56 = arith.mulf %45, %55 : vector<16x16x4xf32>
    %57 = arith.addf %38, %56 : vector<16x16x4xf32>
    %c1_41 = arith.constant 1 : index
    %c2_42 = arith.constant 2 : index
    %c0_43 = arith.constant 0 : index
    %58 = vector.load %arg5[%c1_41, %c2_42, %c0_43] : memref<3x3x4xf32, #tpu.memory_space<vmem>>, vector<1x1x4xf32>
    %59 = vector.shape_cast %58 : vector<1x1x4xf32> to vector<4xf32>
    %60 = vector.shape_cast %59 : vector<4xf32> to vector<1x1x4xf32>
    %61 = vector.broadcast %60 : vector<1x1x4xf32> to vector<16x16x4xf32>
    %62 = arith.mulf %45, %61 : vector<16x16x4xf32>
    %63 = arith.addf %44, %62 : vector<16x16x4xf32>
    %c2_44 = arith.constant 2 : index
    %c0_45 = arith.constant 0 : index
    %c0_46 = arith.constant 0 : index
    %64 = vector.load %arg9[%c2_44, %c0_45, %c0_46] : memref<18x16x4xf32, #tpu.memory_space<vmem>>, vector<16x16x4xf32>
    %c2_47 = arith.constant 2 : index
    %c0_48 = arith.constant 0 : index
    %c0_49 = arith.constant 0 : index
    %65 = vector.load %arg5[%c2_47, %c0_48, %c0_49] : memref<3x3x4xf32, #tpu.memory_space<vmem>>, vector<1x1x4xf32>
    %66 = vector.shape_cast %65 : vector<1x1x4xf32> to vector<4xf32>
    %67 = vector.shape_cast %66 : vector<4xf32> to vector<1x1x4xf32>
    %68 = vector.broadcast %67 : vector<1x1x4xf32> to vector<16x16x4xf32>
    %69 = arith.mulf %64, %68 : vector<16x16x4xf32>
    %70 = arith.addf %51, %69 : vector<16x16x4xf32>
    %c2_50 = arith.constant 2 : index
    %c1_51 = arith.constant 1 : index
    %c0_52 = arith.constant 0 : index
    %71 = vector.load %arg5[%c2_50, %c1_51, %c0_52] : memref<3x3x4xf32, #tpu.memory_space<vmem>>, vector<1x1x4xf32>
    %72 = vector.shape_cast %71 : vector<1x1x4xf32> to vector<4xf32>
    %73 = vector.shape_cast %72 : vector<4xf32> to vector<1x1x4xf32>
    %74 = vector.broadcast %73 : vector<1x1x4xf32> to vector<16x16x4xf32>
    %75 = arith.mulf %64, %74 : vector<16x16x4xf32>
    %76 = arith.addf %57, %75 : vector<16x16x4xf32>
    %c2_53 = arith.constant 2 : index
    %c2_54 = arith.constant 2 : index
    %c0_55 = arith.constant 0 : index
    %77 = vector.load %arg5[%c2_53, %c2_54, %c0_55] : memref<3x3x4xf32, #tpu.memory_space<vmem>>, vector<1x1x4xf32>
    %78 = vector.shape_cast %77 : vector<1x1x4xf32> to vector<4xf32>
    %79 = vector.shape_cast %78 : vector<4xf32> to vector<1x1x4xf32>
    %80 = vector.broadcast %79 : vector<1x1x4xf32> to vector<16x16x4xf32>
    %81 = arith.mulf %64, %80 : vector<16x16x4xf32>
    %82 = arith.addf %63, %81 : vector<16x16x4xf32>
    %cst_56 = arith.constant 0.000000e+00 : f32
    %83 = vector.broadcast %cst_56 : f32 to vector<16x1x4xf32>
    %84 = vector.extract_strided_slice %70 {offsets = [0, 0, 0], sizes = [16, 15, 4], strides = [1, 1, 1]} : vector<16x16x4xf32> to vector<16x15x4xf32>
    %85 = tpu.concatenate %83, %84 in 1 : vector<16x1x4xf32>, vector<16x15x4xf32> -> vector<16x16x4xf32>
    %86 = vector.extract_strided_slice %82 {offsets = [0, 1, 0], sizes = [16, 15, 4], strides = [1, 1, 1]} : vector<16x16x4xf32> to vector<16x15x4xf32>
    %87 = tpu.concatenate %86, %83 in 1 : vector<16x15x4xf32>, vector<16x1x4xf32> -> vector<16x16x4xf32>
    %88 = arith.addf %85, %76 : vector<16x16x4xf32>
    %89 = arith.addf %88, %87 : vector<16x16x4xf32>
    %90 = vector.shape_cast %89 : vector<16x16x4xf32> to vector<256x4xf32>
    %c0_57 = arith.constant 0 : index
    %c0_58 = arith.constant 0 : index
    %91 = vector.load %arg6[%c0_57, %c0_58] : memref<4x4xf32, #tpu.memory_space<vmem>>, vector<4x4xf32>
    %cst_59 = arith.constant dense<0.000000e+00> : vector<256x4xf32>
    %92 = tpu.matmul %90, %91, %cst_59 {dimension_numbers = #tpu.dot_dimension_numbers<[1], [0], [0], [1], [0, 0, 1, 1], [], []>} : vector<256x4xf32>, vector<4x4xf32>, vector<256x4xf32> -> vector<256x4xf32>
    %93 = vector.shape_cast %92 : vector<256x4xf32> to vector<16x16x4xf32>
    %c0_60 = arith.constant 0 : index
    %c0_61 = arith.constant 0 : index
    %94 = vector.load %arg7[%c0_60, %c0_61] : memref<1x4xf32, #tpu.memory_space<vmem>>, vector<1x4xf32>
    %95 = vector.shape_cast %94 : vector<1x4xf32> to vector<4xf32>
    %96 = vector.shape_cast %95 : vector<4xf32> to vector<1x1x4xf32>
    %97 = vector.broadcast %96 : vector<1x1x4xf32> to vector<16x16x4xf32>
    %98 = arith.addf %93, %97 : vector<16x16x4xf32>
    %c1_62 = arith.constant 1 : index
    %c0_63 = arith.constant 0 : index
    %c0_64 = arith.constant 0 : index
    %99 = vector.load %arg9[%c1_62, %c0_63, %c0_64] : memref<18x16x4xf32, #tpu.memory_space<vmem>>, vector<16x16x4xf32>
    %100 = arith.addf %98, %99 : vector<16x16x4xf32>
    %cst_65 = arith.constant 0.000000e+00 : f32
    %101 = vector.broadcast %cst_65 : f32 to vector<16x16x4xf32>
    %102 = arith.maximumf %100, %101 : vector<16x16x4xf32>
    %103 = vector.shape_cast %102 : vector<16x16x4xf32> to vector<1x16x16x4xf32>
    %c0_66 = arith.constant 0 : index
    %c0_67 = arith.constant 0 : index
    %c0_68 = arith.constant 0 : index
    %c0_69 = arith.constant 0 : index
    %104 = vector.load %arg8[%c0_66, %c0_67, %c0_68, %c0_69] : memref<1x16x16x4xf32, #tpu.memory_space<vmem>>, vector<1x16x16x4xf32>
    tpu.vector_store %arg8[%c0_66, %c0_67, %c0_68, %c0_69], %103 {strides = array<i32>} : memref<1x16x16x4xf32, #tpu.memory_space<vmem>>, vector<1x16x16x4xf32>,
    return
  }
  func.func @transform_0(%arg0: i32, %arg1: i32) -> (i32, i32, i32, i32) {
    %c0_i32 = arith.constant 0 : i32
    %c0_i32_0 = arith.constant 0 : i32
    %c0_i32_1 = arith.constant 0 : i32
    return %arg0, %arg1, %c0_i32, %c0_i32_0 : i32, i32, i32, i32
  }
  func.func @transform_1(%arg0: i32, %arg1: i32) -> (i32, i32, i32, i32) {
    %c16_i32 = arith.constant 16 : i32
    %0 = arith.muli %arg1, %c16_i32 : i32
    %c1_i32 = arith.constant 1 : i32
    %1 = arith.subi %0, %c1_i32 : i32
    %c0_i32 = arith.constant 0 : i32
    %2 = arith.maxsi %1, %c0_i32 : i32
    %c0_i32_0 = arith.constant 0 : i32
    %c0_i32_1 = arith.constant 0 : i32
    %c0_i32_2 = arith.constant 0 : i32
    return %arg0, %2, %c0_i32_0, %c0_i32_1 : i32, i32, i32, i32
  }
  func.func @transform_2(%arg0: i32, %arg1: i32) -> (i32, i32, i32, i32) {
    %c16_i32 = arith.constant 16 : i32
    %0 = arith.muli %arg1, %c16_i32 : i32
    %c16_i32_0 = arith.constant 16 : i32
    %1 = arith.addi %0, %c16_i32_0 : i32
    %c15_i32 = arith.constant 15 : i32
    %2 = arith.minsi %1, %c15_i32 : i32
    %c0_i32 = arith.constant 0 : i32
    %c0_i32_1 = arith.constant 0 : i32
    %c0_i32_2 = arith.constant 0 : i32
    return %arg0, %2, %c0_i32, %c0_i32_1 : i32, i32, i32, i32
  }
  func.func @transform_3(%arg0: i32, %arg1: i32) -> (i32, i32, i32) {
    %c0_i32 = arith.constant 0 : i32
    %c0_i32_0 = arith.constant 0 : i32
    %c0_i32_1 = arith.constant 0 : i32
    %c0_i32_2 = arith.constant 0 : i32
    return %c0_i32, %c0_i32_0, %c0_i32_1 : i32, i32, i32
  }
  func.func @transform_4(%arg0: i32, %arg1: i32) -> (i32, i32) {
    %c0_i32 = arith.constant 0 : i32
    %c0_i32_0 = arith.constant 0 : i32
    %c0_i32_1 = arith.constant 0 : i32
    return %c0_i32, %c0_i32_0 : i32, i32
  }
  func.func @transform_5(%arg0: i32, %arg1: i32) -> (i32, i32) {
    %c0_i32 = arith.constant 0 : i32
    %c0_i32_0 = arith.constant 0 : i32
    %c0_i32_1 = arith.constant 0 : i32
    return %c0_i32, %c0_i32_0 : i32, i32
  }
  func.func @transform_6(%arg0: i32, %arg1: i32) -> (i32, i32, i32, i32) {
    %c0_i32 = arith.constant 0 : i32
    %c0_i32_0 = arith.constant 0 : i32
    %c0_i32_1 = arith.constant 0 : i32
    return %arg0, %arg1, %c0_i32, %c0_i32_0 : i32, i32, i32, i32
  }
}

</mosaic_0001>

<llo_original>
// kernel: tpu_custom_call.1
$region0: #{tpu_custom_call.1}
  #allocation0 [shape = 'u32[]', space=smem, size = 0x4, offset = 0x4, fixed_abs, tag = 'smem constant byte address 0x4 - core index']
  #allocation1 [shape = 'u32[144,128]{1,0:T(1,128)}', space=vmem, size = 0x12000, scoped, tag = 'internal scratch']
  #allocation2 [shape = 'f32[18,16,4]{2,1,0:T(8,128)}', space=vmem, size = 0x24000, scoped, tag = 'scratch operand']
  %s0 = inlined_call_operand.vmem [shape: f32[2,16,16,4], index: 0, kind: input, shape index: {}]
  %s1 = inlined_call_operand.vmem [shape: f32[2,16,16,4], index: 1, kind: input, shape index: {}]
  %s2 = inlined_call_operand.vmem [shape: f32[2,16,16,4], index: 2, kind: input, shape index: {}]
  %s3 = inlined_call_operand.vmem [shape: f32[3,3,4], index: 3, kind: input, shape index: {}]
  %s4 = inlined_call_operand.vmem [shape: f32[4,4], index: 4, kind: input, shape index: {}]
  %s5 = inlined_call_operand.vmem [shape: f32[1,4], index: 5, kind: input, shape index: {}]
  %s6 = inlined_call_operand.vmem [shape: f32[2,16,16,4], index: 6, kind: output, shape index: {}]
  %s7 = sld [smem:[#allocation0]]
  $region57: #{tpu_custom_call.1} parent=0
    _
  %s9 = ssub.s32 1, %s7
  %s10 = scalar_select 0, %s9, %s7
  loop: start=0, step=1, limit=4
  $region2: #{tpu_custom_call.1} parent=0 // loop_pre_header
    _
  $region3: #{tpu_custom_call.1} parent=0 // loop_header
    %s12 = sphi 0, %s16
    %p13 = scmp.ge.s32.totalorder %s12, 4
    %s19 = sphi 0, %s31
    %s20 = sphi 0, %s27
    %s21 = sphi 0, %s19
    %s22 = sphi 0, %s20
    %s23 = sphi 0, %s21
    %s24 = sphi 0, %s22
    %s36 = sphi 0, %s38
    %s39 = sphi 0, %s36
    %s40 = sphi 0, %s39
    %s56 = sphi 0, %s40
    %s72 = sphi 0, %s74
    %s75 = sphi 0, %s72
    %s76 = sphi 0, %s75
    %s92 = sphi 0, %s76
    %s108 = sphi 0, %s110
    %s111 = sphi 0, %s108
    %s112 = sphi 0, %s111
    %s128 = sphi 0, %s112
    %s132 = sphi 0, %s132
    %s134 = sphi 0, %s132
    %s135 = sphi 0, %s134
    %s149 = sphi 0, %s135
    %s153 = sphi 0, %s153
    %s155 = sphi 0, %s153
    %s156 = sphi 0, %s155
    %s170 = sphi 0, %s156
    %s174 = sphi 0, %s174
    %s176 = sphi 0, %s174
    %s177 = sphi 0, %s176
    %s191 = sphi 0, %s177
    %s199 = sphi 0, %s201
    %s202 = sphi 0, %s199
    %s203 = sphi 0, %s202
    %s219 = sphi 0, %s203
  $region4: #{tpu_custom_call.1} parent=0 // loop_header_branch
    %15 = sbr.rel (%p13) target = $region8
  $region5: #{tpu_custom_call.1} parent=0 // loop_body
    %s17 = ssub.s32 %s12, 1
    %s18 = ssub.s32 %s12, 2
    %s25 = sadd.s32 1, %s20
    %p26 = scmp.ge.s32.totalorder %s25, 1
    %s27 = scalar_select %p26, 0, %s25
    %s28 = sadd.s32 1, %s19
    %s29 = scalar_select %p26, %s28, %s19
    %p30 = scmp.ge.s32.totalorder %s29, 2
    %s31 = scalar_select %p30, 0, %s29
    %s32 = ssub.s32 %s19, %s31
    %s33 = ssub.s32 %s20, %s27
    %s34 = sor.u32 %s32, %s33
    %p35 = scmp.eq.s32.totalorder %s34, 0
    %s37 = sadd.s32 %s36, 1
    %s38 = scalar_select %p35, %s36, %s37
    %p41 = pneg %p35
    %p42 = scmp.eq.s32.totalorder %s12, 1
    %p43 = por %p41, %p42
    %p44 = scmp.ne.s32.totalorder %s36, %s39
    %p45 = scmp.eq.s32.totalorder %s12, 0
    %p46 = por %p44, %p45
    %p47 = scmp.ne.s32.totalorder %s36, %s39
    %p48 = scmp.eq.s32.totalorder %s17, 1
    %p49 = por %p47, %p48
    %p50 = scmp.ne.s32.totalorder %s39, %s40
    %p51 = scmp.eq.s32.totalorder %s17, 0
    %p52 = por %p50, %p51
    %p53 = scmp.ne.s32.totalorder %s39, %s40
    %p54 = scmp.eq.s32.totalorder %s18, 1
    %p55 = por %p53, %p54
    %p57 = scmp.ne.s32.totalorder %s40, %s56
    %p58 = scmp.eq.s32.totalorder %s18, 0
    %p59 = por %p57, %p58
    %s60 = smul.u32 %s20, 16
    %s61 = ssub.s32 %s60, 1
    %p62 = scmp.gt.s32.totalorder %s61, 0
    %s63 = scalar_select %p62, %s61, 0
    %s64 = smul.u32 %s27, 16
    %s65 = ssub.s32 %s64, 1
    %p66 = scmp.gt.s32.totalorder %s65, 0
    %s67 = scalar_select %p66, %s65, 0
    %s68 = ssub.s32 %s19, %s31
    %s69 = ssub.s32 %s63, %s67
    %s70 = sor.u32 %s68, %s69
    %p71 = scmp.eq.s32.totalorder %s70, 0
    %s73 = sadd.s32 %s72, 1
    %s74 = scalar_select %p71, %s72, %s73
    %p77 = pneg %p71
    %p78 = scmp.eq.s32.totalorder %s12, 1
    %p79 = por %p77, %p78
    %p80 = scmp.ne.s32.totalorder %s72, %s75
    %p81 = scmp.eq.s32.totalorder %s12, 0
    %p82 = por %p80, %p81
    %p83 = scmp.ne.s32.totalorder %s72, %s75
    %p84 = scmp.eq.s32.totalorder %s17, 1
    %p85 = por %p83, %p84
    %p86 = scmp.ne.s32.totalorder %s75, %s76
    %p87 = scmp.eq.s32.totalorder %s17, 0
    %p88 = por %p86, %p87
    %p89 = scmp.ne.s32.totalorder %s75, %s76
    %p90 = scmp.eq.s32.totalorder %s18, 1
    %p91 = por %p89, %p90
    %p93 = scmp.ne.s32.totalorder %s76, %s92
    %p94 = scmp.eq.s32.totalorder %s18, 0
    %p95 = por %p93, %p94
    %s96 = smul.u32 %s20, 16
    %s97 = sadd.s32 %s96, 16
    %p98 = scmp.lt.s32.totalorder %s97, 15
    %s99 = scalar_select %p98, %s97, 15
    %s100 = smul.u32 %s27, 16
    %s101 = sadd.s32 %s100, 16
    %p102 = scmp.lt.s32.totalorder %s101, 15
    %s103 = scalar_select %p102, %s101, 15
    %s104 = ssub.s32 %s19, %s31
    %s105 = ssub.s32 %s99, %s103
    %s106 = sor.u32 %s104, %s105
    %p107 = scmp.eq.s32.totalorder %s106, 0
    %s109 = sadd.s32 %s108, 1
    %s110 = scalar_select %p107, %s108, %s109
    %p113 = pneg %p107
    %p114 = scmp.eq.s32.totalorder %s12, 1
    %p115 = por %p113, %p114
    %p116 = scmp.ne.s32.totalorder %s108, %s111
    %p117 = scmp.eq.s32.totalorder %s12, 0
    %p118 = por %p116, %p117
    %p119 = scmp.ne.s32.totalorder %s108, %s111
    %p120 = scmp.eq.s32.totalorder %s17, 1
    %p121 = por %p119, %p120
    %p122 = scmp.ne.s32.totalorder %s111, %s112
    %p123 = scmp.eq.s32.totalorder %s17, 0
    %p124 = por %p122, %p123
    %p125 = scmp.ne.s32.totalorder %s111, %s112
    %p126 = scmp.eq.s32.totalorder %s18, 1
    %p127 = por %p125, %p126
    %p129 = scmp.ne.s32.totalorder %s112, %s128
    %p130 = scmp.eq.s32.totalorder %s18, 0
    %p131 = por %p129, %p130
    %s133 = sadd.s32 %s132, 1
    %p136 = scmp.eq.s32.totalorder %s12, 1
    %p137 = scmp.ne.s32.totalorder %s132, %s134
    %p138 = scmp.eq.s32.totalorder %s12, 0
    %p139 = por %p137, %p138
    %p140 = scmp.ne.s32.totalorder %s132, %s134
    %p141 = scmp.eq.s32.totalorder %s17, 1
    %p142 = por %p140, %p141
    %p143 = scmp.ne.s32.totalorder %s134, %s135
    %p144 = scmp.eq.s32.totalorder %s17, 0
    %p145 = por %p143, %p144
    %p146 = scmp.ne.s32.totalorder %s134, %s135
    %p147 = scmp.eq.s32.totalorder %s18, 1
    %p148 = por %p146, %p147
    %p150 = scmp.ne.s32.totalorder %s135, %s149
    %p151 = scmp.eq.s32.totalorder %s18, 0
    %p152 = por %p150, %p151
    %s154 = sadd.s32 %s153, 1
    %p157 = scmp.eq.s32.totalorder %s12, 1
    %p158 = scmp.ne.s32.totalorder %s153, %s155
    %p159 = scmp.eq.s32.totalorder %s12, 0
    %p160 = por %p158, %p159
    %p161 = scmp.ne.s32.totalorder %s153, %s155
    %p162 = scmp.eq.s32.totalorder %s17, 1
    %p163 = por %p161, %p162
    %p164 = scmp.ne.s32.totalorder %s155, %s156
    %p165 = scmp.eq.s32.totalorder %s17, 0
    %p166 = por %p164, %p165
    %p167 = scmp.ne.s32.totalorder %s155, %s156
    %p168 = scmp.eq.s32.totalorder %s18, 1
    %p169 = por %p167, %p168
    %p171 = scmp.ne.s32.totalorder %s156, %s170
    %p172 = scmp.eq.s32.totalorder %s18, 0
    %p173 = por %p171, %p172
    %s175 = sadd.s32 %s174, 1
    %p178 = scmp.eq.s32.totalorder %s12, 1
    %p179 = scmp.ne.s32.totalorder %s174, %s176
    %p180 = scmp.eq.s32.totalorder %s12, 0
    %p181 = por %p179, %p180
    %p182 = scmp.ne.s32.totalorder %s174, %s176
    %p183 = scmp.eq.s32.totalorder %s17, 1
    %p184 = por %p182, %p183
    %p185 = scmp.ne.s32.totalorder %s176, %s177
    %p186 = scmp.eq.s32.totalorder %s17, 0
    %p187 = por %p185, %p186
    %p188 = scmp.ne.s32.totalorder %s176, %s177
    %p189 = scmp.eq.s32.totalorder %s18, 1
    %p190 = por %p188, %p189
    %p192 = scmp.ne.s32.totalorder %s177, %s191
    %p193 = scmp.eq.s32.totalorder %s18, 0
    %p194 = por %p192, %p193
    %s195 = ssub.s32 %s19, %s31
    %s196 = ssub.s32 %s20, %s27
    %s197 = sor.u32 %s195, %s196
    %p198 = scmp.eq.s32.totalorder %s197, 0
    %s200 = sadd.s32 %s199, 1
    %s201 = scalar_select %p198, %s199, %s200
    %p204 = pneg %p198
    %p205 = scmp.eq.s32.totalorder %s12, 1
    %p206 = por %p204, %p205
    %p207 = scmp.ne.s32.totalorder %s199, %s202
    %p208 = scmp.eq.s32.totalorder %s12, 0
    %p209 = por %p207, %p208
    %p210 = scmp.ne.s32.totalorder %s199, %s202
    %p211 = scmp.eq.s32.totalorder %s17, 1
    %p212 = por %p210, %p211
    %p213 = scmp.ne.s32.totalorder %s202, %s203
    %p214 = scmp.eq.s32.totalorder %s17, 0
    %p215 = por %p213, %p214
    %p216 = scmp.ne.s32.totalorder %s202, %s203
    %p217 = scmp.eq.s32.totalorder %s18, 1
    %p218 = por %p216, %p217
    %p220 = scmp.ne.s32.totalorder %s203, %s219
    %p221 = scmp.eq.s32.totalorder %s18, 0
    %p222 = por %p220, %p221
    %p223 = scmp.le.s32.totalorder 1, %s12
    %p224 = scmp.lt.s32.totalorder %s12, 3
    %p225 = pnand %p223, %p224
    %p226 = pneg %p225
    // Predicated region
    $region9: #{tpu_custom_call.1} parent=5 // pred_check
      _
    $region10: #{tpu_custom_call.1} parent=5 // pred_check_branch
      %228 = sbr.rel (%p225) target = $region12
    $region11: #{tpu_custom_call.1} parent=5 // pred_region
      %s229 = ssub.s32 %s12, 1
      // Predicated region
      $region13: #{tpu_custom_call.1} parent=11 // pred_check
        %p230 = pneg %p145
      $region14: #{tpu_custom_call.1} parent=11 // pred_check_branch
        %232 = sbr.rel (%p230) target = $region16
      $region15: #{tpu_custom_call.1} parent=11 // pred_region
        _
      $region16: #{tpu_custom_call.1} parent=11 // pred_fallthru
        _
      // Predicated region
      $region17: #{tpu_custom_call.1} parent=11 // pred_check
        %p233 = pneg %p166
      $region18: #{tpu_custom_call.1} parent=11 // pred_check_branch
        %235 = sbr.rel (%p233) target = $region20
      $region19: #{tpu_custom_call.1} parent=11 // pred_region
        _
      $region20: #{tpu_custom_call.1} parent=11 // pred_fallthru
        _
      // Predicated region
      $region21: #{tpu_custom_call.1} parent=11 // pred_check
        %p236 = pneg %p187
      $region22: #{tpu_custom_call.1} parent=11 // pred_check_branch
        %238 = sbr.rel (%p236) target = $region24
      $region23: #{tpu_custom_call.1} parent=11 // pred_region
        _
      $region24: #{tpu_custom_call.1} parent=11 // pred_fallthru
        _
    $region12: #{tpu_custom_call.1} parent=5 // pred_fallthru
      _
    %p239 = scmp.lt.s32.totalorder %s12, 2
    // Predicated region
    $region25: #{tpu_custom_call.1} parent=5 // pred_check
      %p240 = pneg %p239
    $region26: #{tpu_custom_call.1} parent=5 // pred_check_branch
      %242 = sbr.rel (%p240) target = $region28
    $region27: #{tpu_custom_call.1} parent=5 // pred_region
      // Predicated region
      $region29: #{tpu_custom_call.1} parent=27 // pred_check
        %p243 = pneg %p46
      $region30: #{tpu_custom_call.1} parent=27 // pred_check_branch
        %245 = sbr.rel (%p243) target = $region32
      $region31: #{tpu_custom_call.1} parent=27 // pred_region
        %s246 = smul.u32 16, %s20
        %p247 = scmp.lt.s32.totalorder %s19, 1
        %s248 = scalar_select %p247, %s19, 1
        %p249 = scmp.lt.s32.totalorder %s246, 15
        %s250 = scalar_select %p249, %s246, 15
        %s251 = smul.addr %s250, 2
        %s252 = smul.addr %s248, 32
        %s253 = sadd.s32 %s251, %s252
        %s254 = smul.addr %s253, 8
        %s255 = scalar_lea.vmem %s0, %s254
        %s256 = smul.u32 16, %s20
      $region32: #{tpu_custom_call.1} parent=27 // pred_fallthru
        _
      // Predicated region
      $region33: #{tpu_custom_call.1} parent=27 // pred_check
        %p257 = pneg %p82
      $region34: #{tpu_custom_call.1} parent=27 // pred_check_branch
        %259 = sbr.rel (%p257) target = $region36
      $region35: #{tpu_custom_call.1} parent=27 // pred_region
        %s260 = smul.u32 %s20, 16
        %s261 = ssub.s32 %s260, 1
        %p262 = scmp.gt.s32.totalorder %s261, 0
        %s263 = scalar_select %p262, %s261, 0
        %p264 = scmp.lt.s32.totalorder %s19, 1
        %s265 = scalar_select %p264, %s19, 1
        %p266 = scmp.lt.s32.totalorder %s263, 15
        %s267 = scalar_select %p266, %s263, 15
        %s268 = smul.addr %s267, 2
        %s269 = smul.addr %s265, 32
        %s270 = sadd.s32 %s268, %s269
        %s271 = smul.addr %s270, 8
        %s272 = scalar_lea.vmem %s1, %s271
        %s273 = smul.u32 %s20, 16
        %s274 = ssub.s32 %s273, 1
        %p275 = scmp.gt.s32.totalorder %s274, 0
        %s276 = scalar_select %p275, %s274, 0
      $region36: #{tpu_custom_call.1} parent=27 // pred_fallthru
        _
      // Predicated region
      $region37: #{tpu_custom_call.1} parent=27 // pred_check
        %p277 = pneg %p118
      $region38: #{tpu_custom_call.1} parent=27 // pred_check_branch
        %279 = sbr.rel (%p277) target = $region40
      $region39: #{tpu_custom_call.1} parent=27 // pred_region
        %s280 = smul.u32 %s20, 16
        %s281 = sadd.s32 %s280, 16
        %p282 = scmp.lt.s32.totalorder %s281, 15
        %s283 = scalar_select %p282, %s281, 15
        %p284 = scmp.lt.s32.totalorder %s19, 1
        %s285 = scalar_select %p284, %s19, 1
        %p286 = scmp.lt.s32.totalorder %s283, 15
        %s287 = scalar_select %p286, %s283, 15
        %s288 = smul.addr %s287, 2
        %s289 = smul.addr %s285, 32
        %s290 = sadd.s32 %s288, %s289
        %s291 = smul.addr %s290, 8
        %s292 = scalar_lea.vmem %s2, %s291
        %s293 = smul.u32 %s20, 16
        %s294 = sadd.s32 %s293, 16
        %p295 = scmp.lt.s32.totalorder %s294, 15
        %s296 = scalar_select %p295, %s294, 15
      $region40: #{tpu_custom_call.1} parent=27 // pred_fallthru
        _
    $region28: #{tpu_custom_call.1} parent=5 // pred_fallthru
      _
    %p297 = scmp.le.s32.totalorder 1, %s12
    %p298 = scmp.lt.s32.totalorder %s12, 3
    %p299 = pnand %p297, %p298
    %p300 = pneg %p299
    // Predicated region
    $region41: #{tpu_custom_call.1} parent=5 // pred_check
      _
    $region42: #{tpu_custom_call.1} parent=5 // pred_check_branch
      %302 = sbr.rel (%p299) target = $region44
    $region43: #{tpu_custom_call.1} parent=5 // pred_region
      %s303 = ssub.s32 %s12, 1
      %s304 = smul.u32 16, %s22
      %p305 = scmp.lt.s32.totalorder %s21, 1
      %s306 = scalar_select %p305, %s21, 1
      %p307 = scmp.lt.s32.totalorder %s304, 15
      %s308 = scalar_select %p307, %s304, 15
      %s309 = smul.addr %s308, 2
      %s310 = smul.addr %s306, 32
      %s311 = sadd.s32 %s309, %s310
      %s312 = smul.addr %s311, 8
      %s313 = scalar_lea.vmem %s0, %s312
      %p314 = pneg %p52
      %p315 = pneg %p49
      %s316 = smul.u32 %s22, 16
      %s317 = ssub.s32 %s316, 1
      %p318 = scmp.gt.s32.totalorder %s317, 0
      %s319 = scalar_select %p318, %s317, 0
      %p320 = scmp.lt.s32.totalorder %s21, 1
      %s321 = scalar_select %p320, %s21, 1
      %p322 = scmp.lt.s32.totalorder %s319, 15
      %s323 = scalar_select %p322, %s319, 15
      %s324 = smul.addr %s323, 2
      %s325 = smul.addr %s321, 32
      %s326 = sadd.s32 %s324, %s325
      %s327 = smul.addr %s326, 8
      %s328 = scalar_lea.vmem %s1, %s327
      %p329 = pneg %p88
      %p330 = pneg %p85
      %s331 = smul.u32 %s22, 16
      %s332 = sadd.s32 %s331, 16
      %p333 = scmp.lt.s32.totalorder %s332, 15
      %s334 = scalar_select %p333, %s332, 15
      %p335 = scmp.lt.s32.totalorder %s21, 1
      %s336 = scalar_select %p335, %s21, 1
      %p337 = scmp.lt.s32.totalorder %s334, 15
      %s338 = scalar_select %p337, %s334, 15
      %s339 = smul.addr %s338, 2
      %s340 = smul.addr %s336, 32
      %s341 = sadd.s32 %s339, %s340
      %s342 = smul.addr %s341, 8
      %s343 = scalar_lea.vmem %s2, %s342
      %p344 = pneg %p124
      %p345 = pneg %p121
      %p346 = pneg %p145
      %p347 = pneg %p142
      %p348 = pneg %p166
      %p349 = pneg %p163
      %p350 = pneg %p187
      %p351 = pneg %p184
      %p352 = pneg %p215
      %p353 = pneg %p212
      %s354 = smul.u32 16, %s22
      %p355 = scmp.lt.s32.totalorder %s21, 1
      %s356 = scalar_select %p355, %s21, 1
      %p357 = scmp.lt.s32.totalorder %s354, 15
      %s358 = scalar_select %p357, %s354, 15
      %s359 = smul.addr %s358, 2
      %s360 = smul.addr %s356, 32
      %s361 = sadd.s32 %s359, %s360
      %s362 = smul.addr %s361, 8
      %s363 = scalar_lea.vmem %s6, %s362
      %s364 = smul.u32 16, %s22
      %p365 = scmp.lt.s32.totalorder %s21, 1
      %s366 = scalar_select %p365, %s21, 1
      %p367 = scmp.lt.s32.totalorder %s364, 15
      %s368 = scalar_select %p367, %s364, 15
      %s369 = smul.addr %s368, 2
      %s370 = smul.addr %s366, 32
      %s371 = sadd.s32 %s369, %s370
      %s372 = smul.addr %s371, 8
      %s373 = scalar_lea.vmem %s0, %s372
      %s374 = smul.u32 16, %s22
      %s375 = smul.u32 %s22, 16
      %s376 = ssub.s32 %s375, 1
      %p377 = scmp.gt.s32.totalorder %s376, 0
      %s378 = scalar_select %p377, %s376, 0
      %p379 = scmp.lt.s32.totalorder %s21, 1
      %s380 = scalar_select %p379, %s21, 1
      %p381 = scmp.lt.s32.totalorder %s378, 15
      %s382 = scalar_select %p381, %s378, 15
      %s383 = smul.addr %s382, 2
      %s384 = smul.addr %s380, 32
      %s385 = sadd.s32 %s383, %s384
      %s386 = smul.addr %s385, 8
      %s387 = scalar_lea.vmem %s1, %s386
      %s388 = smul.u32 %s22, 16
      %s389 = ssub.s32 %s388, 1
      %p390 = scmp.gt.s32.totalorder %s389, 0
      %s391 = scalar_select %p390, %s389, 0
      %s392 = smul.u32 %s22, 16
      %s393 = sadd.s32 %s392, 16
      %p394 = scmp.lt.s32.totalorder %s393, 15
      %s395 = scalar_select %p394, %s393, 15
      %p396 = scmp.lt.s32.totalorder %s21, 1
      %s397 = scalar_select %p396, %s21, 1
      %p398 = scmp.lt.s32.totalorder %s395, 15
      %s399 = scalar_select %p398, %s395, 15
      %s400 = smul.addr %s399, 2
      %s401 = smul.addr %s397, 32
      %s402 = sadd.s32 %s400, %s401
      %s403 = smul.addr %s402, 8
      %s404 = scalar_lea.vmem %s2, %s403
      %s405 = smul.u32 %s22, 16
      %s406 = sadd.s32 %s405, 16
      %p407 = scmp.lt.s32.totalorder %s406, 15
      %s408 = scalar_select %p407, %s406, 15
      %s409 = smul.u32 16, %s22
      %p410 = scmp.lt.s32.totalorder %s21, 1
      %s411 = scalar_select %p410, %s21, 1
      %p412 = scmp.lt.s32.totalorder %s409, 15
      %s413 = scalar_select %p412, %s409, 15
      %s414 = smul.addr %s413, 2
      %s415 = smul.addr %s411, 32
      %s416 = sadd.s32 %s414, %s415
      %s417 = smul.addr %s416, 8
      %s418 = scalar_lea.vmem %s6, %s417
      %s419 = smul.u32 16, %s22
      %v420 = vld [vmem:[%s373] sm:$0xff]
      %v421 = vld [vmem:[%s373 + $0x8] sm:$0xff]
      %v422 = vld [vmem:[%s373 + $0x10] sm:$0xff]
      %v423 = vld [vmem:[%s373 + $0x18] sm:$0xff]
      %v424 = vld [vmem:[%s373 + $0x20] sm:$0xff]
      %v425 = vld [vmem:[%s373 + $0x28] sm:$0xff]
      %v426 = vld [vmem:[%s373 + $0x30] sm:$0xff]
      %v427 = vld [vmem:[%s373 + $0x38] sm:$0xff]
      %v428 = vld [vmem:[%s373 + $0x40] sm:$0xff]
      %v429 = vld [vmem:[%s373 + $0x48] sm:$0xff]
      %v430 = vld [vmem:[%s373 + $0x50] sm:$0xff]
      %v431 = vld [vmem:[%s373 + $0x58] sm:$0xff]
      %v432 = vld [vmem:[%s373 + $0x60] sm:$0xff]
      %v433 = vld [vmem:[%s373 + $0x68] sm:$0xff]
      %v434 = vld [vmem:[%s373 + $0x70] sm:$0xff]
      %v435 = vld [vmem:[%s373 + $0x78] sm:$0xff]
      %v436 = vld [vmem:[%s373 + $0x80] sm:$0xff]
      %v437 = vld [vmem:[%s373 + $0x88] sm:$0xff]
      %v438 = vld [vmem:[%s373 + $0x90] sm:$0xff]
      %v439 = vld [vmem:[%s373 + $0x98] sm:$0xff]
      %v440 = vld [vmem:[%s373 + $0xa0] sm:$0xff]
      %v441 = vld [vmem:[%s373 + $0xa8] sm:$0xff]
      %v442 = vld [vmem:[%s373 + $0xb0] sm:$0xff]
      %v443 = vld [vmem:[%s373 + $0xb8] sm:$0xff]
      %v444 = vld [vmem:[%s373 + $0xc0] sm:$0xff]
      %v445 = vld [vmem:[%s373 + $0xc8] sm:$0xff]
      %v446 = vld [vmem:[%s373 + $0xd0] sm:$0xff]
      %v447 = vld [vmem:[%s373 + $0xd8] sm:$0xff]
      %v448 = vld [vmem:[%s373 + $0xe0] sm:$0xff]
      %v449 = vld [vmem:[%s373 + $0xe8] sm:$0xff]
      %v450 = vld [vmem:[%s373 + $0xf0] sm:$0xff]
      %v451 = vld [vmem:[%s373 + $0xf8] sm:$0xff]
      %s452 = scalar_lea.vmem [#allocation2], 16
      %vm453 = vcmask 31744
      %454 = vst.msk [vmem:[%s452] sm:$0xff] %vm453, %v420
      %455 = vst.msk [vmem:[%s452 + $0x8] sm:$0xff] %vm453, %v421
      %456 = vst.msk [vmem:[%s452 + $0x10] sm:$0xff] %vm453, %v422
      %457 = vst.msk [vmem:[%s452 + $0x18] sm:$0xff] %vm453, %v423
      %458 = vst.msk [vmem:[%s452 + $0x20] sm:$0xff] %vm453, %v424
      %459 = vst.msk [vmem:[%s452 + $0x28] sm:$0xff] %vm453, %v425
      %460 = vst.msk [vmem:[%s452 + $0x30] sm:$0xff] %vm453, %v426
      %461 = vst.msk [vmem:[%s452 + $0x38] sm:$0xff] %vm453, %v427
      %462 = vst.msk [vmem:[%s452 + $0x40] sm:$0xff] %vm453, %v428
      %463 = vst.msk [vmem:[%s452 + $0x48] sm:$0xff] %vm453, %v429
      %464 = vst.msk [vmem:[%s452 + $0x50] sm:$0xff] %vm453, %v430
      %465 = vst.msk [vmem:[%s452 + $0x58] sm:$0xff] %vm453, %v431
      %466 = vst.msk [vmem:[%s452 + $0x60] sm:$0xff] %vm453, %v432
      %467 = vst.msk [vmem:[%s452 + $0x68] sm:$0xff] %vm453, %v433
      %468 = vst.msk [vmem:[%s452 + $0x70] sm:$0xff] %vm453, %v434
      %469 = vst.msk [vmem:[%s452 + $0x78] sm:$0xff] %vm453, %v435
      %470 = vst.msk [vmem:[%s452 + $0x80] sm:$0xff] %vm453, %v436
      %471 = vst.msk [vmem:[%s452 + $0x88] sm:$0xff] %vm453, %v437
      %472 = vst.msk [vmem:[%s452 + $0x90] sm:$0xff] %vm453, %v438
      %473 = vst.msk [vmem:[%s452 + $0x98] sm:$0xff] %vm453, %v439
      %474 = vst.msk [vmem:[%s452 + $0xa0] sm:$0xff] %vm453, %v440
      %475 = vst.msk [vmem:[%s452 + $0xa8] sm:$0xff] %vm453, %v441
      %476 = vst.msk [vmem:[%s452 + $0xb0] sm:$0xff] %vm453, %v442
      %477 = vst.msk [vmem:[%s452 + $0xb8] sm:$0xff] %vm453, %v443
      %478 = vst.msk [vmem:[%s452 + $0xc0] sm:$0xff] %vm453, %v444
      %479 = vst.msk [vmem:[%s452 + $0xc8] sm:$0xff] %vm453, %v445
      %480 = vst.msk [vmem:[%s452 + $0xd0] sm:$0xff] %vm453, %v446
      %481 = vst.msk [vmem:[%s452 + $0xd8] sm:$0xff] %vm453, %v447
      %482 = vst.msk [vmem:[%s452 + $0xe0] sm:$0xff] %vm453, %v448
      %483 = vst.msk [vmem:[%s452 + $0xe8] sm:$0xff] %vm453, %v449
      %484 = vst.msk [vmem:[%s452 + $0xf0] sm:$0xff] %vm453, %v450
      %485 = vst.msk [vmem:[%s452 + $0xf8] sm:$0xff] %vm453, %v451
      %p486 = scmp.gt.s32.totalorder %s22, 0
      %s487 = scalar_select %p486, 1, 0
      %s488 = scvt.s32.f32 %s487
      %p489 = scmp.lt.s32.totalorder %s22, 0
      %s490 = scalar_select %p489, 1, 0
      %s491 = scvt.s32.f32 %s490
      %v492 = vld [vmem:[%s387] sm:$0xff]
      %v493 = vld [vmem:[%s387 + $0x8] sm:$0xff]
      %v494 = vstv %s488
      %v495 = vmul.f32 %v492, %v494
      %v496 = vmul.f32 %v493, %v494
      %497 = vst.msk [vmem:[#allocation2] sm:$0xff] %vm453, %v495
      %498 = vst.msk [vmem:[#allocation2 + $0x8] sm:$0xff] %vm453, %v496
      %v499 = vld [vmem:[%s404] sm:$0xff]
      %v500 = vld [vmem:[%s404 + $0x8] sm:$0xff]
      %v501 = vstv %s491
      %v502 = vmul.f32 %v499, %v501
      %v503 = vmul.f32 %v500, %v501
      %s504 = scalar_lea.vmem [#allocation2], 272
      %505 = vst.msk [vmem:[%s504] sm:$0xff] %vm453, %v502
      %506 = vst.msk [vmem:[%s504 + $0x8] sm:$0xff] %vm453, %v503
      %v507 = vld [vmem:[#allocation2] sm:$0xff]
      %v508 = vld [vmem:[#allocation2 + $0x8] sm:$0xff]
      %v509 = vld [vmem:[#allocation2 + $0x10] sm:$0xff]
      %v510 = vld [vmem:[#allocation2 + $0x18] sm:$0xff]
      %v511 = vld [vmem:[#allocation2 + $0x20] sm:$0xff]
      %v512 = vld [vmem:[#allocation2 + $0x28] sm:$0xff]
      %v513 = vld [vmem:[#allocation2 + $0x30] sm:$0xff]
      %v514 = vld [vmem:[#allocation2 + $0x38] sm:$0xff]
      %v515 = vld [vmem:[#allocation2 + $0x40] sm:$0xff]
      %v516 = vld [vmem:[#allocation2 + $0x48] sm:$0xff]
      %v517 = vld [vmem:[#allocation2 + $0x50] sm:$0xff]
      %v518 = vld [vmem:[#allocation2 + $0x58] sm:$0xff]
      %v519 = vld [vmem:[#allocation2 + $0x60] sm:$0xff]
      %v520 = vld [vmem:[#allocation2 + $0x68] sm:$0xff]
      %v521 = vld [vmem:[#allocation2 + $0x70] sm:$0xff]
      %v522 = vld [vmem:[#allocation2 + $0x78] sm:$0xff]
      %v523 = vld [vmem:[#allocation2 + $0x80] sm:$0xff]
      %v524 = vld [vmem:[#allocation2 + $0x88] sm:$0xff]
      %v525 = vld [vmem:[#allocation2 + $0x90] sm:$0xff]
      %v526 = vld [vmem:[#allocation2 + $0x98] sm:$0xff]
      %v527 = vld [vmem:[#allocation2 + $0xa0] sm:$0xff]
      %v528 = vld [vmem:[#allocation2 + $0xa8] sm:$0xff]
      %v529 = vld [vmem:[#allocation2 + $0xb0] sm:$0xff]
      %v530 = vld [vmem:[#allocation2 + $0xb8] sm:$0xff]
      %v531 = vld [vmem:[#allocation2 + $0xc0] sm:$0xff]
      %v532 = vld [vmem:[#allocation2 + $0xc8] sm:$0xff]
      %v533 = vld [vmem:[#allocation2 + $0xd0] sm:$0xff]
      %v534 = vld [vmem:[#allocation2 + $0xd8] sm:$0xff]
      %v535 = vld [vmem:[#allocation2 + $0xe0] sm:$0xff]
      %v536 = vld [vmem:[#allocation2 + $0xe8] sm:$0xff]
      %v537 = vld [vmem:[#allocation2 + $0xf0] sm:$0xff]
      %v538 = vld [vmem:[#allocation2 + $0xf8] sm:$0xff]
      %v539 = vld [vmem:[%s3] sm:$0x1]
      %v540 = vlaneseq
      %v541 = vshrl.u32 %v540, 7
      %v542 = vsub.s32 0, %v541
      %v543 = vrot.slane %v539, %v542
      %v544 = vmul.f32 %v507, %v543
      %v545 = vmul.f32 %v508, %v543
      %v546 = vmul.f32 %v509, %v543
      %v547 = vmul.f32 %v510, %v543
      %v548 = vmul.f32 %v511, %v543
      %v549 = vmul.f32 %v512, %v543
      %v550 = vmul.f32 %v513, %v543
      %v551 = vmul.f32 %v514, %v543
      %v552 = vmul.f32 %v515, %v543
      %v553 = vmul.f32 %v516, %v543
      %v554 = vmul.f32 %v517, %v543
      %v555 = vmul.f32 %v518, %v543
      %v556 = vmul.f32 %v519, %v543
      %v557 = vmul.f32 %v520, %v543
      %v558 = vmul.f32 %v521, %v543
      %v559 = vmul.f32 %v522, %v543
      %v560 = vmul.f32 %v523, %v543
      %v561 = vmul.f32 %v524, %v543
      %v562 = vmul.f32 %v525, %v543
      %v563 = vmul.f32 %v526, %v543
      %v564 = vmul.f32 %v527, %v543
      %v565 = vmul.f32 %v528, %v543
      %v566 = vmul.f32 %v529, %v543
      %v567 = vmul.f32 %v530, %v543
      %v568 = vmul.f32 %v531, %v543
      %v569 = vmul.f32 %v532, %v543
      %v570 = vmul.f32 %v533, %v543
      %v571 = vmul.f32 %v534, %v543
      %v572 = vmul.f32 %v535, %v543
      %v573 = vmul.f32 %v536, %v543
      %v574 = vmul.f32 %v537, %v543
      %v575 = vmul.f32 %v538, %v543
      %v576 = vadd.f32 %v544, 0.0
      %v577 = vadd.f32 %v545, 0.0
      %v578 = vadd.f32 %v546, 0.0
      %v579 = vadd.f32 %v547, 0.0
      %v580 = vadd.f32 %v548, 0.0
      %v581 = vadd.f32 %v549, 0.0
      %v582 = vadd.f32 %v550, 0.0
      %v583 = vadd.f32 %v551, 0.0
      %v584 = vadd.f32 %v552, 0.0
      %v585 = vadd.f32 %v553, 0.0
      %v586 = vadd.f32 %v554, 0.0
      %v587 = vadd.f32 %v555, 0.0
      %v588 = vadd.f32 %v556, 0.0
      %v589 = vadd.f32 %v557, 0.0
      %v590 = vadd.f32 %v558, 0.0
      %v591 = vadd.f32 %v559, 0.0
      %v592 = vadd.f32 %v560, 0.0
      %v593 = vadd.f32 %v561, 0.0
      %v594 = vadd.f32 %v562, 0.0
      %v595 = vadd.f32 %v563, 0.0
      %v596 = vadd.f32 %v564, 0.0
      %v597 = vadd.f32 %v565, 0.0
      %v598 = vadd.f32 %v566, 0.0
      %v599 = vadd.f32 %v567, 0.0
      %v600 = vadd.f32 %v568, 0.0
      %v601 = vadd.f32 %v569, 0.0
      %v602 = vadd.f32 %v570, 0.0
      %v603 = vadd.f32 %v571, 0.0
      %v604 = vadd.f32 %v572, 0.0
      %v605 = vadd.f32 %v573, 0.0
      %v606 = vadd.f32 %v574, 0.0
      %v607 = vadd.f32 %v575, 0.0
      %v608 = vld [vmem:[%s3 + $0x1] sm:$0x1]
      %v609 = vlaneseq
      %v610 = vshrl.u32 %v609, 7
      %v611 = vsub.s32 0, %v610
      %v612 = vrot.slane %v608, %v611
      %v613 = vmul.f32 %v507, %v612
      %v614 = vmul.f32 %v508, %v612
      %v615 = vmul.f32 %v509, %v612
      %v616 = vmul.f32 %v510, %v612
      %v617 = vmul.f32 %v511, %v612
      %v618 = vmul.f32 %v512, %v612
      %v619 = vmul.f32 %v513, %v612
      %v620 = vmul.f32 %v514, %v612
      %v621 = vmul.f32 %v515, %v612
      %v622 = vmul.f32 %v516, %v612
      %v623 = vmul.f32 %v517, %v612
      %v624 = vmul.f32 %v518, %v612
      %v625 = vmul.f32 %v519, %v612
      %v626 = vmul.f32 %v520, %v612
      %v627 = vmul.f32 %v521, %v612
      %v628 = vmul.f32 %v522, %v612
      %v629 = vmul.f32 %v523, %v612
      %v630 = vmul.f32 %v524, %v612
      %v631 = vmul.f32 %v525, %v612
      %v632 = vmul.f32 %v526, %v612
      %v633 = vmul.f32 %v527, %v612
      %v634 = vmul.f32 %v528, %v612
      %v635 = vmul.f32 %v529, %v612
      %v636 = vmul.f32 %v530, %v612
      %v637 = vmul.f32 %v531, %v612
      %v638 = vmul.f32 %v532, %v612
      %v639 = vmul.f32 %v533, %v612
      %v640 = vmul.f32 %v534, %v612
      %v641 = vmul.f32 %v535, %v612
      %v642 = vmul.f32 %v536, %v612
      %v643 = vmul.f32 %v537, %v612
      %v644 = vmul.f32 %v538, %v612
      %v645 = vadd.f32 %v613, 0.0
      %v646 = vadd.f32 %v614, 0.0
      %v647 = vadd.f32 %v615, 0.0
      %v648 = vadd.f32 %v616, 0.0
      %v649 = vadd.f32 %v617, 0.0
      %v650 = vadd.f32 %v618, 0.0
      %v651 = vadd.f32 %v619, 0.0
      %v652 = vadd.f32 %v620, 0.0
      %v653 = vadd.f32 %v621, 0.0
      %v654 = vadd.f32 %v622, 0.0
      %v655 = vadd.f32 %v623, 0.0
      %v656 = vadd.f32 %v624, 0.0
      %v657 = vadd.f32 %v625, 0.0
      %v658 = vadd.f32 %v626, 0.0
      %v659 = vadd.f32 %v627, 0.0
      %v660 = vadd.f32 %v628, 0.0
      %v661 = vadd.f32 %v629, 0.0
      %v662 = vadd.f32 %v630, 0.0
      %v663 = vadd.f32 %v631, 0.0
      %v664 = vadd.f32 %v632, 0.0
      %v665 = vadd.f32 %v633, 0.0
      %v666 = vadd.f32 %v634, 0.0
      %v667 = vadd.f32 %v635, 0.0
      %v668 = vadd.f32 %v636, 0.0
      %v669 = vadd.f32 %v637, 0.0
      %v670 = vadd.f32 %v638, 0.0
      %v671 = vadd.f32 %v639, 0.0
      %v672 = vadd.f32 %v640, 0.0
      %v673 = vadd.f32 %v641, 0.0
      %v674 = vadd.f32 %v642, 0.0
      %v675 = vadd.f32 %v643, 0.0
      %v676 = vadd.f32 %v644, 0.0
      %v677 = vld [vmem:[%s3 + $0x2] sm:$0x1]
      %v678 = vlaneseq
      %v679 = vshrl.u32 %v678, 7
      %v680 = vsub.s32 0, %v679
      %v681 = vrot.slane %v677, %v680
      %v682 = vmul.f32 %v507, %v681
      %v683 = vmul.f32 %v508, %v681
      %v684 = vmul.f32 %v509, %v681
      %v685 = vmul.f32 %v510, %v681
      %v686 = vmul.f32 %v511, %v681
      %v687 = vmul.f32 %v512, %v681
      %v688 = vmul.f32 %v513, %v681
      %v689 = vmul.f32 %v514, %v681
      %v690 = vmul.f32 %v515, %v681
      %v691 = vmul.f32 %v516, %v681
      %v692 = vmul.f32 %v517, %v681
      %v693 = vmul.f32 %v518, %v681
      %v694 = vmul.f32 %v519, %v681
      %v695 = vmul.f32 %v520, %v681
      %v696 = vmul.f32 %v521, %v681
      %v697 = vmul.f32 %v522, %v681
      %v698 = vmul.f32 %v523, %v681
      %v699 = vmul.f32 %v524, %v681
      %v700 = vmul.f32 %v525, %v681
      %v701 = vmul.f32 %v526, %v681
      %v702 = vmul.f32 %v527, %v681
      %v703 = vmul.f32 %v528, %v681
      %v704 = vmul.f32 %v529, %v681
      %v705 = vmul.f32 %v530, %v681
      %v706 = vmul.f32 %v531, %v681
      %v707 = vmul.f32 %v532, %v681
      %v708 = vmul.f32 %v533, %v681
      %v709 = vmul.f32 %v534, %v681
      %v710 = vmul.f32 %v535, %v681
      %v711 = vmul.f32 %v536, %v681
      %v712 = vmul.f32 %v537, %v681
      %v713 = vmul.f32 %v538, %v681
      %v714 = vadd.f32 %v682, 0.0
      %v715 = vadd.f32 %v683, 0.0
      %v716 = vadd.f32 %v684, 0.0
      %v717 = vadd.f32 %v685, 0.0
      %v718 = vadd.f32 %v686, 0.0
      %v719 = vadd.f32 %v687, 0.0
      %v720 = vadd.f32 %v688, 0.0
      %v721 = vadd.f32 %v689, 0.0
      %v722 = vadd.f32 %v690, 0.0
      %v723 = vadd.f32 %v691, 0.0
      %v724 = vadd.f32 %v692, 0.0
      %v725 = vadd.f32 %v693, 0.0
      %v726 = vadd.f32 %v694, 0.0
      %v727 = vadd.f32 %v695, 0.0
      %v728 = vadd.f32 %v696, 0.0
      %v729 = vadd.f32 %v697, 0.0
      %v730 = vadd.f32 %v698, 0.0
      %v731 = vadd.f32 %v699, 0.0
      %v732 = vadd.f32 %v700, 0.0
      %v733 = vadd.f32 %v701, 0.0
      %v734 = vadd.f32 %v702, 0.0
      %v735 = vadd.f32 %v703, 0.0
      %v736 = vadd.f32 %v704, 0.0
      %v737 = vadd.f32 %v705, 0.0
      %v738 = vadd.f32 %v706, 0.0
      %v739 = vadd.f32 %v707, 0.0
      %v740 = vadd.f32 %v708, 0.0
      %v741 = vadd.f32 %v709, 0.0
      %v742 = vadd.f32 %v710, 0.0
      %v743 = vadd.f32 %v711, 0.0
      %v744 = vadd.f32 %v712, 0.0
      %v745 = vadd.f32 %v713, 0.0
      %v746 = vld [vmem:[%s452] sm:$0xff]
      %v747 = vld [vmem:[%s452 + $0x8] sm:$0xff]
      %v748 = vld [vmem:[%s452 + $0x10] sm:$0xff]
      %v749 = vld [vmem:[%s452 + $0x18] sm:$0xff]
      %v750 = vld [vmem:[%s452 + $0x20] sm:$0xff]
      %v751 = vld [vmem:[%s452 + $0x28] sm:$0xff]
      %v752 = vld [vmem:[%s452 + $0x30] sm:$0xff]
      %v753 = vld [vmem:[%s452 + $0x38] sm:$0xff]
      %v754 = vld [vmem:[%s452 + $0x40] sm:$0xff]
      %v755 = vld [vmem:[%s452 + $0x48] sm:$0xff]
      %v756 = vld [vmem:[%s452 + $0x50] sm:$0xff]
      %v757 = vld [vmem:[%s452 + $0x58] sm:$0xff]
      %v758 = vld [vmem:[%s452 + $0x60] sm:$0xff]
      %v759 = vld [vmem:[%s452 + $0x68] sm:$0xff]
      %v760 = vld [vmem:[%s452 + $0x70] sm:$0xff]
      %v761 = vld [vmem:[%s452 + $0x78] sm:$0xff]
      %v762 = vld [vmem:[%s452 + $0x80] sm:$0xff]
      %v763 = vld [vmem:[%s452 + $0x88] sm:$0xff]
      %v764 = vld [vmem:[%s452 + $0x90] sm:$0xff]
      %v765 = vld [vmem:[%s452 + $0x98] sm:$0xff]
      %v766 = vld [vmem:[%s452 + $0xa0] sm:$0xff]
      %v767 = vld [vmem:[%s452 + $0xa8] sm:$0xff]
      %v768 = vld [vmem:[%s452 + $0xb0] sm:$0xff]
      %v769 = vld [vmem:[%s452 + $0xb8] sm:$0xff]
      %v770 = vld [vmem:[%s452 + $0xc0] sm:$0xff]
      %v771 = vld [vmem:[%s452 + $0xc8] sm:$0xff]
      %v772 = vld [vmem:[%s452 + $0xd0] sm:$0xff]
      %v773 = vld [vmem:[%s452 + $0xd8] sm:$0xff]
      %v774 = vld [vmem:[%s452 + $0xe0] sm:$0xff]
      %v775 = vld [vmem:[%s452 + $0xe8] sm:$0xff]
      %v776 = vld [vmem:[%s452 + $0xf0] sm:$0xff]
      %v777 = vld [vmem:[%s452 + $0xf8] sm:$0xff]
      %s778 = scalar_lea.vmem %s3, 4
      %v779 = vld [vmem:[%s778] sm:$0x1]
      %v780 = vlaneseq
      %v781 = vshrl.u32 %v780, 7
      %v782 = vsub.s32 0, %v781
      %v783 = vrot.slane %v779, %v782
      %v784 = vmul.f32 %v746, %v783
      %v785 = vmul.f32 %v747, %v783
      %v786 = vmul.f32 %v748, %v783
      %v787 = vmul.f32 %v749, %v783
      %v788 = vmul.f32 %v750, %v783
      %v789 = vmul.f32 %v751, %v783
      %v790 = vmul.f32 %v752, %v783
      %v791 = vmul.f32 %v753, %v783
      %v792 = vmul.f32 %v754, %v783
      %v793 = vmul.f32 %v755, %v783
      %v794 = vmul.f32 %v756, %v783
      %v795 = vmul.f32 %v757, %v783
      %v796 = vmul.f32 %v758, %v783
      %v797 = vmul.f32 %v759, %v783
      %v798 = vmul.f32 %v760, %v783
      %v799 = vmul.f32 %v761, %v783
      %v800 = vmul.f32 %v762, %v783
      %v801 = vmul.f32 %v763, %v783
      %v802 = vmul.f32 %v764, %v783
      %v803 = vmul.f32 %v765, %v783
      %v804 = vmul.f32 %v766, %v783
      %v805 = vmul.f32 %v767, %v783
      %v806 = vmul.f32 %v768, %v783
      %v807 = vmul.f32 %v769, %v783
      %v808 = vmul.f32 %v770, %v783
      %v809 = vmul.f32 %v771, %v783
      %v810 = vmul.f32 %v772, %v783
      %v811 = vmul.f32 %v773, %v783
      %v812 = vmul.f32 %v774, %v783
      %v813 = vmul.f32 %v775, %v783
      %v814 = vmul.f32 %v776, %v783
      %v815 = vmul.f32 %v777, %v783
      %v816 = vadd.f32 %v576, %v784
      %v817 = vadd.f32 %v577, %v785
      %v818 = vadd.f32 %v578, %v786
      %v819 = vadd.f32 %v579, %v787
      %v820 = vadd.f32 %v580, %v788
      %v821 = vadd.f32 %v581, %v789
      %v822 = vadd.f32 %v582, %v790
      %v823 = vadd.f32 %v583, %v791
      %v824 = vadd.f32 %v584, %v792
      %v825 = vadd.f32 %v585, %v793
      %v826 = vadd.f32 %v586, %v794
      %v827 = vadd.f32 %v587, %v795
      %v828 = vadd.f32 %v588, %v796
      %v829 = vadd.f32 %v589, %v797
      %v830 = vadd.f32 %v590, %v798
      %v831 = vadd.f32 %v591, %v799
      %v832 = vadd.f32 %v592, %v800
      %v833 = vadd.f32 %v593, %v801
      %v834 = vadd.f32 %v594, %v802
      %v835 = vadd.f32 %v595, %v803
      %v836 = vadd.f32 %v596, %v804
      %v837 = vadd.f32 %v597, %v805
      %v838 = vadd.f32 %v598, %v806
      %v839 = vadd.f32 %v599, %v807
      %v840 = vadd.f32 %v600, %v808
      %v841 = vadd.f32 %v601, %v809
      %v842 = vadd.f32 %v602, %v810
      %v843 = vadd.f32 %v603, %v811
      %v844 = vadd.f32 %v604, %v812
      %v845 = vadd.f32 %v605, %v813
      %v846 = vadd.f32 %v606, %v814
      %v847 = vadd.f32 %v607, %v815
      %v848 = vld [vmem:[%s778 + $0x1] sm:$0x1]
      %v849 = vlaneseq
      %v850 = vshrl.u32 %v849, 7
      %v851 = vsub.s32 0, %v850
      %v852 = vrot.slane %v848, %v851
      %v853 = vmul.f32 %v746, %v852
      %v854 = vmul.f32 %v747, %v852
      %v855 = vmul.f32 %v748, %v852
      %v856 = vmul.f32 %v749, %v852
      %v857 = vmul.f32 %v750, %v852
      %v858 = vmul.f32 %v751, %v852
      %v859 = vmul.f32 %v752, %v852
      %v860 = vmul.f32 %v753, %v852
      %v861 = vmul.f32 %v754, %v852
      %v862 = vmul.f32 %v755, %v852
      %v863 = vmul.f32 %v756, %v852
      %v864 = vmul.f32 %v757, %v852
      %v865 = vmul.f32 %v758, %v852
      %v866 = vmul.f32 %v759, %v852
      %v867 = vmul.f32 %v760, %v852
      %v868 = vmul.f32 %v761, %v852
      %v869 = vmul.f32 %v762, %v852
      %v870 = vmul.f32 %v763, %v852
      %v871 = vmul.f32 %v764, %v852
      %v872 = vmul.f32 %v765, %v852
      %v873 = vmul.f32 %v766, %v852
      %v874 = vmul.f32 %v767, %v852
      %v875 = vmul.f32 %v768, %v852
      %v876 = vmul.f32 %v769, %v852
      %v877 = vmul.f32 %v770, %v852
      %v878 = vmul.f32 %v771, %v852
      %v879 = vmul.f32 %v772, %v852
      %v880 = vmul.f32 %v773, %v852
      %v881 = vmul.f32 %v774, %v852
      %v882 = vmul.f32 %v775, %v852
      %v883 = vmul.f32 %v776, %v852
      %v884 = vmul.f32 %v777, %v852
      %v885 = vadd.f32 %v645, %v853
      %v886 = vadd.f32 %v646, %v854
      %v887 = vadd.f32 %v647, %v855
      %v888 = vadd.f32 %v648, %v856
      %v889 = vadd.f32 %v649, %v857
      %v890 = vadd.f32 %v650, %v858
      %v891 = vadd.f32 %v651, %v859
      %v892 = vadd.f32 %v652, %v860
      %v893 = vadd.f32 %v653, %v861
      %v894 = vadd.f32 %v654, %v862
      %v895 = vadd.f32 %v655, %v863
      %v896 = vadd.f32 %v656, %v864
      %v897 = vadd.f32 %v657, %v865
      %v898 = vadd.f32 %v658, %v866
      %v899 = vadd.f32 %v659, %v867
      %v900 = vadd.f32 %v660, %v868
      %v901 = vadd.f32 %v661, %v869
      %v902 = vadd.f32 %v662, %v870
      %v903 = vadd.f32 %v663, %v871
      %v904 = vadd.f32 %v664, %v872
      %v905 = vadd.f32 %v665, %v873
      %v906 = vadd.f32 %v666, %v874
      %v907 = vadd.f32 %v667, %v875
      %v908 = vadd.f32 %v668, %v876
      %v909 = vadd.f32 %v669, %v877
      %v910 = vadd.f32 %v670, %v878
      %v911 = vadd.f32 %v671, %v879
      %v912 = vadd.f32 %v672, %v880
      %v913 = vadd.f32 %v673, %v881
      %v914 = vadd.f32 %v674, %v882
      %v915 = vadd.f32 %v675, %v883
      %v916 = vadd.f32 %v676, %v884
      %v917 = vld [vmem:[%s778 + $0x2] sm:$0x1]
      %v918 = vlaneseq
      %v919 = vshrl.u32 %v918, 7
      %v920 = vsub.s32 0, %v919
      %v921 = vrot.slane %v917, %v920
      %v922 = vmul.f32 %v746, %v921
      %v923 = vmul.f32 %v747, %v921
      %v924 = vmul.f32 %v748, %v921
      %v925 = vmul.f32 %v749, %v921
      %v926 = vmul.f32 %v750, %v921
      %v927 = vmul.f32 %v751, %v921
      %v928 = vmul.f32 %v752, %v921
      %v929 = vmul.f32 %v753, %v921
      %v930 = vmul.f32 %v754, %v921
      %v931 = vmul.f32 %v755, %v921
      %v932 = vmul.f32 %v756, %v921
      %v933 = vmul.f32 %v757, %v921
      %v934 = vmul.f32 %v758, %v921
      %v935 = vmul.f32 %v759, %v921
      %v936 = vmul.f32 %v760, %v921
      %v937 = vmul.f32 %v761, %v921
      %v938 = vmul.f32 %v762, %v921
      %v939 = vmul.f32 %v763, %v921
      %v940 = vmul.f32 %v764, %v921
      %v941 = vmul.f32 %v765, %v921
      %v942 = vmul.f32 %v766, %v921
      %v943 = vmul.f32 %v767, %v921
      %v944 = vmul.f32 %v768, %v921
      %v945 = vmul.f32 %v769, %v921
      %v946 = vmul.f32 %v770, %v921
      %v947 = vmul.f32 %v771, %v921
      %v948 = vmul.f32 %v772, %v921
      %v949 = vmul.f32 %v773, %v921
      %v950 = vmul.f32 %v774, %v921
      %v951 = vmul.f32 %v775, %v921
      %v952 = vmul.f32 %v776, %v921
      %v953 = vmul.f32 %v777, %v921
      %v954 = vadd.f32 %v714, %v922
      %v955 = vadd.f32 %v715, %v923
      %v956 = vadd.f32 %v716, %v924
      %v957 = vadd.f32 %v717, %v925
      %v958 = vadd.f32 %v718, %v926
      %v959 = vadd.f32 %v719, %v927
      %v960 = vadd.f32 %v720, %v928
      %v961 = vadd.f32 %v721, %v929
      %v962 = vadd.f32 %v722, %v930
      %v963 = vadd.f32 %v723, %v931
      %v964 = vadd.f32 %v724, %v932
      %v965 = vadd.f32 %v725, %v933
      %v966 = vadd.f32 %v726, %v934
      %v967 = vadd.f32 %v727, %v935
      %v968 = vadd.f32 %v728, %v936
      %v969 = vadd.f32 %v729, %v937
      %v970 = vadd.f32 %v730, %v938
      %v971 = vadd.f32 %v731, %v939
      %v972 = vadd.f32 %v732, %v940
      %v973 = vadd.f32 %v733, %v941
      %v974 = vadd.f32 %v734, %v942
      %v975 = vadd.f32 %v735, %v943
      %v976 = vadd.f32 %v736, %v944
      %v977 = vadd.f32 %v737, %v945
      %v978 = vadd.f32 %v738, %v946
      %v979 = vadd.f32 %v739, %v947
      %v980 = vadd.f32 %v740, %v948
      %v981 = vadd.f32 %v741, %v949
      %v982 = vadd.f32 %v742, %v950
      %v983 = vadd.f32 %v743, %v951
      %v984 = vadd.f32 %v744, %v952
      %v985 = vadd.f32 %v745, %v953
      %s986 = scalar_lea.vmem [#allocation2], 32
      %v987 = vld [vmem:[%s986] sm:$0xff]
      %v988 = vld [vmem:[%s986 + $0x8] sm:$0xff]
      %v989 = vld [vmem:[%s986 + $0x10] sm:$0xff]
      %v990 = vld [vmem:[%s986 + $0x18] sm:$0xff]
      %v991 = vld [vmem:[%s986 + $0x20] sm:$0xff]
      %v992 = vld [vmem:[%s986 + $0x28] sm:$0xff]
      %v993 = vld [vmem:[%s986 + $0x30] sm:$0xff]
      %v994 = vld [vmem:[%s986 + $0x38] sm:$0xff]
      %v995 = vld [vmem:[%s986 + $0x40] sm:$0xff]
      %v996 = vld [vmem:[%s986 + $0x48] sm:$0xff]
      %v997 = vld [vmem:[%s986 + $0x50] sm:$0xff]
      %v998 = vld [vmem:[%s986 + $0x58] sm:$0xff]
      %v999 = vld [vmem:[%s986 + $0x60] sm:$0xff]
      %v1000 = vld [vmem:[%s986 + $0x68] sm:$0xff]
      %v1001 = vld [vmem:[%s986 + $0x70] sm:$0xff]
      %v1002 = vld [vmem:[%s986 + $0x78] sm:$0xff]
      %v1003 = vld [vmem:[%s986 + $0x80] sm:$0xff]
      %v1004 = vld [vmem:[%s986 + $0x88] sm:$0xff]
      %v1005 = vld [vmem:[%s986 + $0x90] sm:$0xff]
      %v1006 = vld [vmem:[%s986 + $0x98] sm:$0xff]
      %v1007 = vld [vmem:[%s986 + $0xa0] sm:$0xff]
      %v1008 = vld [vmem:[%s986 + $0xa8] sm:$0xff]
      %v1009 = vld [vmem:[%s986 + $0xb0] sm:$0xff]
      %v1010 = vld [vmem:[%s986 + $0xb8] sm:$0xff]
      %v1011 = vld [vmem:[%s986 + $0xc0] sm:$0xff]
      %v1012 = vld [vmem:[%s986 + $0xc8] sm:$0xff]
      %v1013 = vld [vmem:[%s986 + $0xd0] sm:$0xff]
      %v1014 = vld [vmem:[%s986 + $0xd8] sm:$0xff]
      %v1015 = vld [vmem:[%s986 + $0xe0] sm:$0xff]
      %v1016 = vld [vmem:[%s986 + $0xe8] sm:$0xff]
      %v1017 = vld [vmem:[%s986 + $0xf0] sm:$0xff]
      %v1018 = vld [vmem:[%s986 + $0xf8] sm:$0xff]
      %s1019 = scalar_lea.vmem %s3, 8
      %v1020 = vld [vmem:[%s1019] sm:$0x1]
      %v1021 = vlaneseq
      %v1022 = vshrl.u32 %v1021, 7
      %v1023 = vsub.s32 0, %v1022
      %v1024 = vrot.slane %v1020, %v1023
      %v1025 = vmul.f32 %v987, %v1024
      %v1026 = vmul.f32 %v988, %v1024
      %v1027 = vmul.f32 %v989, %v1024
      %v1028 = vmul.f32 %v990, %v1024
      %v1029 = vmul.f32 %v991, %v1024
      %v1030 = vmul.f32 %v992, %v1024
      %v1031 = vmul.f32 %v993, %v1024
      %v1032 = vmul.f32 %v994, %v1024
      %v1033 = vmul.f32 %v995, %v1024
      %v1034 = vmul.f32 %v996, %v1024
      %v1035 = vmul.f32 %v997, %v1024
      %v1036 = vmul.f32 %v998, %v1024
      %v1037 = vmul.f32 %v999, %v1024
      %v1038 = vmul.f32 %v1000, %v1024
      %v1039 = vmul.f32 %v1001, %v1024
      %v1040 = vmul.f32 %v1002, %v1024
      %v1041 = vmul.f32 %v1003, %v1024
      %v1042 = vmul.f32 %v1004, %v1024
      %v1043 = vmul.f32 %v1005, %v1024
      %v1044 = vmul.f32 %v1006, %v1024
      %v1045 = vmul.f32 %v1007, %v1024
      %v1046 = vmul.f32 %v1008, %v1024
      %v1047 = vmul.f32 %v1009, %v1024
      %v1048 = vmul.f32 %v1010, %v1024
      %v1049 = vmul.f32 %v1011, %v1024
      %v1050 = vmul.f32 %v1012, %v1024
      %v1051 = vmul.f32 %v1013, %v1024
      %v1052 = vmul.f32 %v1014, %v1024
      %v1053 = vmul.f32 %v1015, %v1024
      %v1054 = vmul.f32 %v1016, %v1024
      %v1055 = vmul.f32 %v1017, %v1024
      %v1056 = vmul.f32 %v1018, %v1024
      %v1057 = vadd.f32 %v816, %v1025
      %v1058 = vadd.f32 %v817, %v1026
      %v1059 = vadd.f32 %v818, %v1027
      %v1060 = vadd.f32 %v819, %v1028
      %v1061 = vadd.f32 %v820, %v1029
      %v1062 = vadd.f32 %v821, %v1030
      %v1063 = vadd.f32 %v822, %v1031
      %v1064 = vadd.f32 %v823, %v1032
      %v1065 = vadd.f32 %v824, %v1033
      %v1066 = vadd.f32 %v825, %v1034
      %v1067 = vadd.f32 %v826, %v1035
      %v1068 = vadd.f32 %v827, %v1036
      %v1069 = vadd.f32 %v828, %v1037
      %v1070 = vadd.f32 %v829, %v1038
      %v1071 = vadd.f32 %v830, %v1039
      %v1072 = vadd.f32 %v831, %v1040
      %v1073 = vadd.f32 %v832, %v1041
      %v1074 = vadd.f32 %v833, %v1042
      %v1075 = vadd.f32 %v834, %v1043
      %v1076 = vadd.f32 %v835, %v1044
      %v1077 = vadd.f32 %v836, %v1045
      %v1078 = vadd.f32 %v837, %v1046
      %v1079 = vadd.f32 %v838, %v1047
      %v1080 = vadd.f32 %v839, %v1048
      %v1081 = vadd.f32 %v840, %v1049
      %v1082 = vadd.f32 %v841, %v1050
      %v1083 = vadd.f32 %v842, %v1051
      %v1084 = vadd.f32 %v843, %v1052
      %v1085 = vadd.f32 %v844, %v1053
      %v1086 = vadd.f32 %v845, %v1054
      %v1087 = vadd.f32 %v846, %v1055
      %v1088 = vadd.f32 %v847, %v1056
      %v1089 = vld [vmem:[%s1019 + $0x1] sm:$0x1]
      %v1090 = vlaneseq
      %v1091 = vshrl.u32 %v1090, 7
      %v1092 = vsub.s32 0, %v1091
      %v1093 = vrot.slane %v1089, %v1092
      %v1094 = vmul.f32 %v987, %v1093
      %v1095 = vmul.f32 %v988, %v1093
      %v1096 = vmul.f32 %v989, %v1093
      %v1097 = vmul.f32 %v990, %v1093
      %v1098 = vmul.f32 %v991, %v1093
      %v1099 = vmul.f32 %v992, %v1093
      %v1100 = vmul.f32 %v993, %v1093
      %v1101 = vmul.f32 %v994, %v1093
      %v1102 = vmul.f32 %v995, %v1093
      %v1103 = vmul.f32 %v996, %v1093
      %v1104 = vmul.f32 %v997, %v1093
      %v1105 = vmul.f32 %v998, %v1093
      %v1106 = vmul.f32 %v999, %v1093
      %v1107 = vmul.f32 %v1000, %v1093
      %v1108 = vmul.f32 %v1001, %v1093
      %v1109 = vmul.f32 %v1002, %v1093
      %v1110 = vmul.f32 %v1003, %v1093
      %v1111 = vmul.f32 %v1004, %v1093
      %v1112 = vmul.f32 %v1005, %v1093
      %v1113 = vmul.f32 %v1006, %v1093
      %v1114 = vmul.f32 %v1007, %v1093
      %v1115 = vmul.f32 %v1008, %v1093
      %v1116 = vmul.f32 %v1009, %v1093
      %v1117 = vmul.f32 %v1010, %v1093
      %v1118 = vmul.f32 %v1011, %v1093
      %v1119 = vmul.f32 %v1012, %v1093
      %v1120 = vmul.f32 %v1013, %v1093
      %v1121 = vmul.f32 %v1014, %v1093
      %v1122 = vmul.f32 %v1015, %v1093
      %v1123 = vmul.f32 %v1016, %v1093
      %v1124 = vmul.f32 %v1017, %v1093
      %v1125 = vmul.f32 %v1018, %v1093
      %v1126 = vadd.f32 %v885, %v1094
      %v1127 = vadd.f32 %v886, %v1095
      %v1128 = vadd.f32 %v887, %v1096
      %v1129 = vadd.f32 %v888, %v1097
      %v1130 = vadd.f32 %v889, %v1098
      %v1131 = vadd.f32 %v890, %v1099
      %v1132 = vadd.f32 %v891, %v1100
      %v1133 = vadd.f32 %v892, %v1101
      %v1134 = vadd.f32 %v893, %v1102
      %v1135 = vadd.f32 %v894, %v1103
      %v1136 = vadd.f32 %v895, %v1104
      %v1137 = vadd.f32 %v896, %v1105
      %v1138 = vadd.f32 %v897, %v1106
      %v1139 = vadd.f32 %v898, %v1107
      %v1140 = vadd.f32 %v899, %v1108
      %v1141 = vadd.f32 %v900, %v1109
      %v1142 = vadd.f32 %v901, %v1110
      %v1143 = vadd.f32 %v902, %v1111
      %v1144 = vadd.f32 %v903, %v1112
      %v1145 = vadd.f32 %v904, %v1113
      %v1146 = vadd.f32 %v905, %v1114
      %v1147 = vadd.f32 %v906, %v1115
      %v1148 = vadd.f32 %v907, %v1116
      %v1149 = vadd.f32 %v908, %v1117
      %v1150 = vadd.f32 %v909, %v1118
      %v1151 = vadd.f32 %v910, %v1119
      %v1152 = vadd.f32 %v911, %v1120
      %v1153 = vadd.f32 %v912, %v1121
      %v1154 = vadd.f32 %v913, %v1122
      %v1155 = vadd.f32 %v914, %v1123
      %v1156 = vadd.f32 %v915, %v1124
      %v1157 = vadd.f32 %v916, %v1125
      %v1158 = vld [vmem:[%s1019 + $0x2] sm:$0x1]
      %v1159 = vlaneseq
      %v1160 = vshrl.u32 %v1159, 7
      %v1161 = vsub.s32 0, %v1160
      %v1162 = vrot.slane %v1158, %v1161
      %v1163 = vmul.f32 %v987, %v1162
      %v1164 = vmul.f32 %v988, %v1162
      %v1165 = vmul.f32 %v989, %v1162
      %v1166 = vmul.f32 %v990, %v1162
      %v1167 = vmul.f32 %v991, %v1162
      %v1168 = vmul.f32 %v992, %v1162
      %v1169 = vmul.f32 %v993, %v1162
      %v1170 = vmul.f32 %v994, %v1162
      %v1171 = vmul.f32 %v995, %v1162
      %v1172 = vmul.f32 %v996, %v1162
      %v1173 = vmul.f32 %v997, %v1162
      %v1174 = vmul.f32 %v998, %v1162
      %v1175 = vmul.f32 %v999, %v1162
      %v1176 = vmul.f32 %v1000, %v1162
      %v1177 = vmul.f32 %v1001, %v1162
      %v1178 = vmul.f32 %v1002, %v1162
      %v1179 = vmul.f32 %v1003, %v1162
      %v1180 = vmul.f32 %v1004, %v1162
      %v1181 = vmul.f32 %v1005, %v1162
      %v1182 = vmul.f32 %v1006, %v1162
      %v1183 = vmul.f32 %v1007, %v1162
      %v1184 = vmul.f32 %v1008, %v1162
      %v1185 = vmul.f32 %v1009, %v1162
      %v1186 = vmul.f32 %v1010, %v1162
      %v1187 = vmul.f32 %v1011, %v1162
      %v1188 = vmul.f32 %v1012, %v1162
      %v1189 = vmul.f32 %v1013, %v1162
      %v1190 = vmul.f32 %v1014, %v1162
      %v1191 = vmul.f32 %v1015, %v1162
      %v1192 = vmul.f32 %v1016, %v1162
      %v1193 = vmul.f32 %v1017, %v1162
      %v1194 = vmul.f32 %v1018, %v1162
      %v1195 = vadd.f32 %v954, %v1163
      %v1196 = vadd.f32 %v955, %v1164
      %v1197 = vadd.f32 %v956, %v1165
      %v1198 = vadd.f32 %v957, %v1166
      %v1199 = vadd.f32 %v958, %v1167
      %v1200 = vadd.f32 %v959, %v1168
      %v1201 = vadd.f32 %v960, %v1169
      %v1202 = vadd.f32 %v961, %v1170
      %v1203 = vadd.f32 %v962, %v1171
      %v1204 = vadd.f32 %v963, %v1172
      %v1205 = vadd.f32 %v964, %v1173
      %v1206 = vadd.f32 %v965, %v1174
      %v1207 = vadd.f32 %v966, %v1175
      %v1208 = vadd.f32 %v967, %v1176
      %v1209 = vadd.f32 %v968, %v1177
      %v1210 = vadd.f32 %v969, %v1178
      %v1211 = vadd.f32 %v970, %v1179
      %v1212 = vadd.f32 %v971, %v1180
      %v1213 = vadd.f32 %v972, %v1181
      %v1214 = vadd.f32 %v973, %v1182
      %v1215 = vadd.f32 %v974, %v1183
      %v1216 = vadd.f32 %v975, %v1184
      %v1217 = vadd.f32 %v976, %v1185
      %v1218 = vadd.f32 %v977, %v1186
      %v1219 = vadd.f32 %v978, %v1187
      %v1220 = vadd.f32 %v979, %v1188
      %v1221 = vadd.f32 %v980, %v1189
      %v1222 = vadd.f32 %v981, %v1190
      %v1223 = vadd.f32 %v982, %v1191
      %v1224 = vadd.f32 %v983, %v1192
      %v1225 = vadd.f32 %v984, %v1193
      %v1226 = vadd.f32 %v985, %v1194
      %vm1259 = vcmask 1040384
      %v1260 = vrot.slane %v1057, 7
      %v1261 = vrot.slane %v1058, 7
      %v1262 = vsel %vm1259, %v1260, %v1261
      %v1263 = vrot.slane %v1059, 7
      %v1264 = vrot.slane %v1060, 7
      %v1265 = vsel %vm1259, %v1263, %v1264
      %v1266 = vrot.slane %v1061, 7
      %v1267 = vrot.slane %v1062, 7
      %v1268 = vsel %vm1259, %v1266, %v1267
      %v1269 = vrot.slane %v1063, 7
      %v1270 = vrot.slane %v1064, 7
      %v1271 = vsel %vm1259, %v1269, %v1270
      %v1272 = vrot.slane %v1065, 7
      %v1273 = vrot.slane %v1066, 7
      %v1274 = vsel %vm1259, %v1272, %v1273
      %v1275 = vrot.slane %v1067, 7
      %v1276 = vrot.slane %v1068, 7
      %v1277 = vsel %vm1259, %v1275, %v1276
      %v1278 = vrot.slane %v1069, 7
      %v1279 = vrot.slane %v1070, 7
      %v1280 = vsel %vm1259, %v1278, %v1279
      %v1281 = vrot.slane %v1071, 7
      %v1282 = vrot.slane %v1072, 7
      %v1283 = vsel %vm1259, %v1281, %v1282
      %v1284 = vrot.slane %v1073, 7
      %v1285 = vrot.slane %v1074, 7
      %v1286 = vsel %vm1259, %v1284, %v1285
      %v1287 = vrot.slane %v1075, 7
      %v1288 = vrot.slane %v1076, 7
      %v1289 = vsel %vm1259, %v1287, %v1288
      %v1290 = vrot.slane %v1077, 7
      %v1291 = vrot.slane %v1078, 7
      %v1292 = vsel %vm1259, %v1290, %v1291
      %v1293 = vrot.slane %v1079, 7
      %v1294 = vrot.slane %v1080, 7
      %v1295 = vsel %vm1259, %v1293, %v1294
      %v1296 = vrot.slane %v1081, 7
      %v1297 = vrot.slane %v1082, 7
      %v1298 = vsel %vm1259, %v1296, %v1297
      %v1299 = vrot.slane %v1083, 7
      %v1300 = vrot.slane %v1084, 7
      %v1301 = vsel %vm1259, %v1299, %v1300
      %v1302 = vrot.slane %v1085, 7
      %v1303 = vrot.slane %v1086, 7
      %v1304 = vsel %vm1259, %v1302, %v1303
      %v1305 = vrot.slane %v1087, 7
      %v1306 = vrot.slane %v1088, 7
      %v1307 = vsel %vm1259, %v1305, %v1306
      %v1340 = vsel %vm1259, 0.0, %v1260
      %v1341 = vsel %vm1259, 0.0, %v1263
      %v1342 = vsel %vm1259, 0.0, %v1266
      %v1343 = vsel %vm1259, 0.0, %v1269
      %v1344 = vsel %vm1259, 0.0, %v1272
      %v1345 = vsel %vm1259, 0.0, %v1275
      %v1346 = vsel %vm1259, 0.0, %v1278
      %v1347 = vsel %vm1259, 0.0, %v1281
      %v1348 = vsel %vm1259, 0.0, %v1284
      %v1349 = vsel %vm1259, 0.0, %v1287
      %v1350 = vsel %vm1259, 0.0, %v1290
      %v1351 = vsel %vm1259, 0.0, %v1293
      %v1352 = vsel %vm1259, 0.0, %v1296
      %v1353 = vsel %vm1259, 0.0, %v1299
      %v1354 = vsel %vm1259, 0.0, %v1302
      %v1355 = vsel %vm1259, 0.0, %v1305
      %vm1388 = vcmask 1046528
      %v1389 = vrot.slane %v1195, 1
      %v1390 = vrot.slane %v1196, 1
      %v1391 = vsel %vm1388, %v1389, %v1390
      %v1392 = vrot.slane %v1197, 1
      %v1393 = vrot.slane %v1198, 1
      %v1394 = vsel %vm1388, %v1392, %v1393
      %v1395 = vrot.slane %v1199, 1
      %v1396 = vrot.slane %v1200, 1
      %v1397 = vsel %vm1388, %v1395, %v1396
      %v1398 = vrot.slane %v1201, 1
      %v1399 = vrot.slane %v1202, 1
      %v1400 = vsel %vm1388, %v1398, %v1399
      %v1401 = vrot.slane %v1203, 1
      %v1402 = vrot.slane %v1204, 1
      %v1403 = vsel %vm1388, %v1401, %v1402
      %v1404 = vrot.slane %v1205, 1
      %v1405 = vrot.slane %v1206, 1
      %v1406 = vsel %vm1388, %v1404, %v1405
      %v1407 = vrot.slane %v1207, 1
      %v1408 = vrot.slane %v1208, 1
      %v1409 = vsel %vm1388, %v1407, %v1408
      %v1410 = vrot.slane %v1209, 1
      %v1411 = vrot.slane %v1210, 1
      %v1412 = vsel %vm1388, %v1410, %v1411
      %v1413 = vrot.slane %v1211, 1
      %v1414 = vrot.slane %v1212, 1
      %v1415 = vsel %vm1388, %v1413, %v1414
      %v1416 = vrot.slane %v1213, 1
      %v1417 = vrot.slane %v1214, 1
      %v1418 = vsel %vm1388, %v1416, %v1417
      %v1419 = vrot.slane %v1215, 1
      %v1420 = vrot.slane %v1216, 1
      %v1421 = vsel %vm1388, %v1419, %v1420
      %v1422 = vrot.slane %v1217, 1
      %v1423 = vrot.slane %v1218, 1
      %v1424 = vsel %vm1388, %v1422, %v1423
      %v1425 = vrot.slane %v1219, 1
      %v1426 = vrot.slane %v1220, 1
      %v1427 = vsel %vm1388, %v1425, %v1426
      %v1428 = vrot.slane %v1221, 1
      %v1429 = vrot.slane %v1222, 1
      %v1430 = vsel %vm1388, %v1428, %v1429
      %v1431 = vrot.slane %v1223, 1
      %v1432 = vrot.slane %v1224, 1
      %v1433 = vsel %vm1388, %v1431, %v1432
      %v1434 = vrot.slane %v1225, 1
      %v1435 = vrot.slane %v1226, 1
      %v1436 = vsel %vm1388, %v1434, %v1435
      %v1469 = vsel %vm1388, %v1390, 0.0
      %v1470 = vsel %vm1388, %v1393, 0.0
      %v1471 = vsel %vm1388, %v1396, 0.0
      %v1472 = vsel %vm1388, %v1399, 0.0
      %v1473 = vsel %vm1388, %v1402, 0.0
      %v1474 = vsel %vm1388, %v1405, 0.0
      %v1475 = vsel %vm1388, %v1408, 0.0
      %v1476 = vsel %vm1388, %v1411, 0.0
      %v1477 = vsel %vm1388, %v1414, 0.0
      %v1478 = vsel %vm1388, %v1417, 0.0
      %v1479 = vsel %vm1388, %v1420, 0.0
      %v1480 = vsel %vm1388, %v1423, 0.0
      %v1481 = vsel %vm1388, %v1426, 0.0
      %v1482 = vsel %vm1388, %v1429, 0.0
      %v1483 = vsel %vm1388, %v1432, 0.0
      %v1484 = vsel %vm1388, %v1435, 0.0
      %v1485 = vadd.f32 %v1340, %v1126
      %v1486 = vadd.f32 %v1262, %v1127
      %v1487 = vadd.f32 %v1341, %v1128
      %v1488 = vadd.f32 %v1265, %v1129
      %v1489 = vadd.f32 %v1342, %v1130
      %v1490 = vadd.f32 %v1268, %v1131
      %v1491 = vadd.f32 %v1343, %v1132
      %v1492 = vadd.f32 %v1271, %v1133
      %v1493 = vadd.f32 %v1344, %v1134
      %v1494 = vadd.f32 %v1274, %v1135
      %v1495 = vadd.f32 %v1345, %v1136
      %v1496 = vadd.f32 %v1277, %v1137
      %v1497 = vadd.f32 %v1346, %v1138
      %v1498 = vadd.f32 %v1280, %v1139
      %v1499 = vadd.f32 %v1347, %v1140
      %v1500 = vadd.f32 %v1283, %v1141
      %v1501 = vadd.f32 %v1348, %v1142
      %v1502 = vadd.f32 %v1286, %v1143
      %v1503 = vadd.f32 %v1349, %v1144
      %v1504 = vadd.f32 %v1289, %v1145
      %v1505 = vadd.f32 %v1350, %v1146
      %v1506 = vadd.f32 %v1292, %v1147
      %v1507 = vadd.f32 %v1351, %v1148
      %v1508 = vadd.f32 %v1295, %v1149
      %v1509 = vadd.f32 %v1352, %v1150
      %v1510 = vadd.f32 %v1298, %v1151
      %v1511 = vadd.f32 %v1353, %v1152
      %v1512 = vadd.f32 %v1301, %v1153
      %v1513 = vadd.f32 %v1354, %v1154
      %v1514 = vadd.f32 %v1304, %v1155
      %v1515 = vadd.f32 %v1355, %v1156
      %v1516 = vadd.f32 %v1307, %v1157
      %v1517 = vadd.f32 %v1485, %v1391
      %v1518 = vadd.f32 %v1486, %v1469
      %v1519 = vadd.f32 %v1487, %v1394
      %v1520 = vadd.f32 %v1488, %v1470
      %v1521 = vadd.f32 %v1489, %v1397
      %v1522 = vadd.f32 %v1490, %v1471
      %v1523 = vadd.f32 %v1491, %v1400
      %v1524 = vadd.f32 %v1492, %v1472
      %v1525 = vadd.f32 %v1493, %v1403
      %v1526 = vadd.f32 %v1494, %v1473
      %v1527 = vadd.f32 %v1495, %v1406
      %v1528 = vadd.f32 %v1496, %v1474
      %v1529 = vadd.f32 %v1497, %v1409
      %v1530 = vadd.f32 %v1498, %v1475
      %v1531 = vadd.f32 %v1499, %v1412
      %v1532 = vadd.f32 %v1500, %v1476
      %v1533 = vadd.f32 %v1501, %v1415
      %v1534 = vadd.f32 %v1502, %v1477
      %v1535 = vadd.f32 %v1503, %v1418
      %v1536 = vadd.f32 %v1504, %v1478
      %v1537 = vadd.f32 %v1505, %v1421
      %v1538 = vadd.f32 %v1506, %v1479
      %v1539 = vadd.f32 %v1507, %v1424
      %v1540 = vadd.f32 %v1508, %v1480
      %v1541 = vadd.f32 %v1509, %v1427
      %v1542 = vadd.f32 %v1510, %v1481
      %v1543 = vadd.f32 %v1511, %v1430
      %v1544 = vadd.f32 %v1512, %v1482
      %v1545 = vadd.f32 %v1513, %v1433
      %v1546 = vadd.f32 %v1514, %v1483
      %v1547 = vadd.f32 %v1515, %v1436
      %v1548 = vadd.f32 %v1516, %v1484
      %v1549 = vld [vmem:[%s4] sm:$0xf]
      %v1551 = vsel %vm453, %v1517, 0
      %v1554 = vsel %vm453, %v1518, 0
      %v1557 = vsel %vm453, %v1519, 0
      %v1560 = vsel %vm453, %v1520, 0
      %v1563 = vsel %vm453, %v1521, 0
      %v1566 = vsel %vm453, %v1522, 0
      %v1569 = vsel %vm453, %v1523, 0
      %v1572 = vsel %vm453, %v1524, 0
      %v1575 = vsel %vm453, %v1525, 0
      %v1578 = vsel %vm453, %v1526, 0
      %v1581 = vsel %vm453, %v1527, 0
      %v1584 = vsel %vm453, %v1528, 0
      %v1587 = vsel %vm453, %v1529, 0
      %v1590 = vsel %vm453, %v1530, 0
      %v1593 = vsel %vm453, %v1531, 0
      %v1596 = vsel %vm453, %v1532, 0
      %v1599 = vsel %vm453, %v1533, 0
      %v1602 = vsel %vm453, %v1534, 0
      %v1605 = vsel %vm453, %v1535, 0
      %v1608 = vsel %vm453, %v1536, 0
      %v1611 = vsel %vm453, %v1537, 0
      %v1614 = vsel %vm453, %v1538, 0
      %v1617 = vsel %vm453, %v1539, 0
      %v1620 = vsel %vm453, %v1540, 0
      %v1623 = vsel %vm453, %v1541, 0
      %v1626 = vsel %vm453, %v1542, 0
      %v1629 = vsel %vm453, %v1543, 0
      %v1632 = vsel %vm453, %v1544, 0
      %v1635 = vsel %vm453, %v1545, 0
      %v1638 = vsel %vm453, %v1546, 0
      %v1641 = vsel %vm453, %v1547, 0
      %v1644 = vsel %vm453, %v1548, 0
      %vm1646 = vcmask 1043456
      %v1648 = vsel %vm1646, %v1549, 0
      %1650 = vmatprep.subr.mxu0 0.0
      %1651 = vmatpush1.msra.mxu0 %v1648
      %1652 = vmatprep.subr.mxu0 0.0
      %1653 = vmatpush1.msra.mxu0 0.0
      %1654 = vmatprep.subr.mxu0 0.0
      %1655 = vmatpush1.msra.mxu0 0.0
      %1656 = vmatprep.subr.mxu0 0.0
      %1657 = vmatpush1.msra.mxu0 0.0
      %1658 = vmatprep.subr.mxu0 0.0
      %1659 = vmatpush1.msra.mxu0 0.0
      %1660 = vmatprep.subr.mxu0 0.0
      %1661 = vmatpush1.msra.mxu0 0.0
      %1662 = vmatprep.subr.mxu0 0.0
      %1663 = vmatpush1.msra.mxu0 0.0
      %1664 = vmatprep.subr.mxu0 0.0
      %1665 = vmatpush1.msra.mxu0 0.0
      %1666 = vmatprep.subr.mxu0 0.0
      %1667 = vmatpush1.msra.mxu0 0.0
      %1668 = vmatprep.subr.mxu0 0.0
      %1669 = vmatpush1.msra.mxu0 0.0
      %1670 = vmatprep.subr.mxu0 0.0
      %1671 = vmatpush1.msra.mxu0 0.0
      %1672 = vmatprep.subr.mxu0 0.0
      %1673 = vmatpush1.msra.mxu0 0.0
      %1674 = vmatprep.subr.mxu0 0.0
      %1675 = vmatpush1.msra.mxu0 0.0
      %1676 = vmatprep.subr.mxu0 0.0
      %1677 = vmatpush1.msra.mxu0 0.0
      %1678 = vmatprep.subr.mxu0 0.0
      %1679 = vmatpush1.msra.mxu0 0.0
      %1680 = vmatprep.subr.mxu0 0.0
      %1681 = vmatpush1.msra.mxu0 0.0
      %1682 = vmatprep.subr.mxu0 0.0
      %1683 = vmatpush1.msra.mxu0 0.0
      %1684 = vmatprep.subr.mxu0 0.0
      %1685 = vmatpush1.msra.mxu0 0.0
      %1686 = vmatprep.subr.mxu0 0.0
      %1687 = vmatpush1.msra.mxu0 0.0
      %1688 = vmatprep.subr.mxu0 0.0
      %1689 = vmatpush1.msra.mxu0 0.0
      %1690 = vmatprep.subr.mxu0 0.0
      %1691 = vmatpush1.msra.mxu0 0.0
      %1692 = vmatprep.subr.mxu0 0.0
      %1693 = vmatpush1.msra.mxu0 0.0
      %1694 = vmatprep.subr.mxu0 0.0
      %1695 = vmatpush1.msra.mxu0 0.0
      %1696 = vmatprep.subr.mxu0 0.0
      %1697 = vmatpush1.msra.mxu0 0.0
      %1698 = vmatprep.subr.mxu0 0.0
      %1699 = vmatpush1.msra.mxu0 0.0
      %1700 = vmatprep.subr.mxu0 0.0
      %1701 = vmatpush1.msra.mxu0 0.0
      %1702 = vmatprep.subr.mxu0 0.0
      %1703 = vmatpush1.msra.mxu0 0.0
      %1704 = vmatprep.subr.mxu0 0.0
      %1705 = vmatpush1.msra.mxu0 0.0
      %1706 = vmatprep.subr.mxu0 0.0
      %1707 = vmatpush1.msra.mxu0 0.0
      %1708 = vmatprep.subr.mxu0 0.0
      %1709 = vmatpush1.msra.mxu0 0.0
      %1710 = vmatprep.subr.mxu0 0.0
      %1711 = vmatpush1.msra.mxu0 0.0
      %1712 = vmatprep.subr.mxu0 0.0
      %1713 = vmatpush1.msra.mxu0 0.0
      %1714 = vmatprep.mubr.f32.mxu0 0.0
      %1715 = vmatmul.mubr.f32.gmra.mrb[0].mxu0 %v1551
      %v1716 = vpop.f32.mrb[0].mxu0
      %v1717 = vadd.f32 0.0, %v1716
      %v1718 = vpop.f32.mrb[0].mxu0
      %1719 = vmatprep.mubr.f32.mxu0 0.0
      %1720 = vmatmul.mubr.f32.gmra.mrb[0].mxu0 %v1554
      %v1721 = vpop.f32.mrb[0].mxu0
      %v1722 = vadd.f32 0.0, %v1721
      %v1723 = vpop.f32.mrb[0].mxu0
      %1724 = vmatprep.mubr.f32.mxu0 0.0
      %1725 = vmatmul.mubr.f32.gmra.mrb[0].mxu0 %v1557
      %v1726 = vpop.f32.mrb[0].mxu0
      %v1727 = vadd.f32 0.0, %v1726
      %v1728 = vpop.f32.mrb[0].mxu0
      %1729 = vmatprep.mubr.f32.mxu0 0.0
      %1730 = vmatmul.mubr.f32.gmra.mrb[0].mxu0 %v1560
      %v1731 = vpop.f32.mrb[0].mxu0
      %v1732 = vadd.f32 0.0, %v1731
      %v1733 = vpop.f32.mrb[0].mxu0
      %1734 = vmatprep.mubr.f32.mxu0 0.0
      %1735 = vmatmul.mubr.f32.gmra.mrb[0].mxu0 %v1563
      %v1736 = vpop.f32.mrb[0].mxu0
      %v1737 = vadd.f32 0.0, %v1736
      %v1738 = vpop.f32.mrb[0].mxu0
      %1739 = vmatprep.mubr.f32.mxu0 0.0
      %1740 = vmatmul.mubr.f32.gmra.mrb[0].mxu0 %v1566
      %v1741 = vpop.f32.mrb[0].mxu0
      %v1742 = vadd.f32 0.0, %v1741
      %v1743 = vpop.f32.mrb[0].mxu0
      %1744 = vmatprep.mubr.f32.mxu0 0.0
      %1745 = vmatmul.mubr.f32.gmra.mrb[0].mxu0 %v1569
      %v1746 = vpop.f32.mrb[0].mxu0
      %v1747 = vadd.f32 0.0, %v1746
      %v1748 = vpop.f32.mrb[0].mxu0
      %1749 = vmatprep.mubr.f32.mxu0 0.0
      %1750 = vmatmul.mubr.f32.gmra.mrb[0].mxu0 %v1572
      %v1751 = vpop.f32.mrb[0].mxu0
      %v1752 = vadd.f32 0.0, %v1751
      %v1753 = vpop.f32.mrb[0].mxu0
      %1754 = vmatprep.mubr.f32.mxu0 0.0
      %1755 = vmatmul.mubr.f32.gmra.mrb[0].mxu0 %v1575
      %v1756 = vpop.f32.mrb[0].mxu0
      %v1757 = vadd.f32 0.0, %v1756
      %v1758 = vpop.f32.mrb[0].mxu0
      %1759 = vmatprep.mubr.f32.mxu0 0.0
      %1760 = vmatmul.mubr.f32.gmra.mrb[0].mxu0 %v1578
      %v1761 = vpop.f32.mrb[0].mxu0
      %v1762 = vadd.f32 0.0, %v1761
      %v1763 = vpop.f32.mrb[0].mxu0
      %1764 = vmatprep.mubr.f32.mxu0 0.0
      %1765 = vmatmul.mubr.f32.gmra.mrb[0].mxu0 %v1581
      %v1766 = vpop.f32.mrb[0].mxu0
      %v1767 = vadd.f32 0.0, %v1766
      %v1768 = vpop.f32.mrb[0].mxu0
      %1769 = vmatprep.mubr.f32.mxu0 0.0
      %1770 = vmatmul.mubr.f32.gmra.mrb[0].mxu0 %v1584
      %v1771 = vpop.f32.mrb[0].mxu0
      %v1772 = vadd.f32 0.0, %v1771
      %v1773 = vpop.f32.mrb[0].mxu0
      %1774 = vmatprep.mubr.f32.mxu0 0.0
      %1775 = vmatmul.mubr.f32.gmra.mrb[0].mxu0 %v1587
      %v1776 = vpop.f32.mrb[0].mxu0
      %v1777 = vadd.f32 0.0, %v1776
      %v1778 = vpop.f32.mrb[0].mxu0
      %1779 = vmatprep.mubr.f32.mxu0 0.0
      %1780 = vmatmul.mubr.f32.gmra.mrb[0].mxu0 %v1590
      %v1781 = vpop.f32.mrb[0].mxu0
      %v1782 = vadd.f32 0.0, %v1781
      %v1783 = vpop.f32.mrb[0].mxu0
      %1784 = vmatprep.mubr.f32.mxu0 0.0
      %1785 = vmatmul.mubr.f32.gmra.mrb[0].mxu0 %v1593
      %v1786 = vpop.f32.mrb[0].mxu0
      %v1787 = vadd.f32 0.0, %v1786
      %v1788 = vpop.f32.mrb[0].mxu0
      %1789 = vmatprep.mubr.f32.mxu0 0.0
      %1790 = vmatmul.mubr.f32.gmra.mrb[0].mxu0 %v1596
      %v1791 = vpop.f32.mrb[0].mxu0
      %v1792 = vadd.f32 0.0, %v1791
      %v1793 = vpop.f32.mrb[0].mxu0
      %1794 = vmatprep.mubr.f32.mxu0 0.0
      %1795 = vmatmul.mubr.f32.gmra.mrb[0].mxu0 %v1599
      %v1796 = vpop.f32.mrb[0].mxu0
      %v1797 = vadd.f32 0.0, %v1796
      %v1798 = vpop.f32.mrb[0].mxu0
      %1799 = vmatprep.mubr.f32.mxu0 0.0
      %1800 = vmatmul.mubr.f32.gmra.mrb[0].mxu0 %v1602
      %v1801 = vpop.f32.mrb[0].mxu0
      %v1802 = vadd.f32 0.0, %v1801
      %v1803 = vpop.f32.mrb[0].mxu0
      %1804 = vmatprep.mubr.f32.mxu0 0.0
      %1805 = vmatmul.mubr.f32.gmra.mrb[0].mxu0 %v1605
      %v1806 = vpop.f32.mrb[0].mxu0
      %v1807 = vadd.f32 0.0, %v1806
      %v1808 = vpop.f32.mrb[0].mxu0
      %1809 = vmatprep.mubr.f32.mxu0 0.0
      %1810 = vmatmul.mubr.f32.gmra.mrb[0].mxu0 %v1608
      %v1811 = vpop.f32.mrb[0].mxu0
      %v1812 = vadd.f32 0.0, %v1811
      %v1813 = vpop.f32.mrb[0].mxu0
      %1814 = vmatprep.mubr.f32.mxu0 0.0
      %1815 = vmatmul.mubr.f32.gmra.mrb[0].mxu0 %v1611
      %v1816 = vpop.f32.mrb[0].mxu0
      %v1817 = vadd.f32 0.0, %v1816
      %v1818 = vpop.f32.mrb[0].mxu0
      %1819 = vmatprep.mubr.f32.mxu0 0.0
      %1820 = vmatmul.mubr.f32.gmra.mrb[0].mxu0 %v1614
      %v1821 = vpop.f32.mrb[0].mxu0
      %v1822 = vadd.f32 0.0, %v1821
      %v1823 = vpop.f32.mrb[0].mxu0
      %1824 = vmatprep.mubr.f32.mxu0 0.0
      %1825 = vmatmul.mubr.f32.gmra.mrb[0].mxu0 %v1617
      %v1826 = vpop.f32.mrb[0].mxu0
      %v1827 = vadd.f32 0.0, %v1826
      %v1828 = vpop.f32.mrb[0].mxu0
      %1829 = vmatprep.mubr.f32.mxu0 0.0
      %1830 = vmatmul.mubr.f32.gmra.mrb[0].mxu0 %v1620
      %v1831 = vpop.f32.mrb[0].mxu0
      %v1832 = vadd.f32 0.0, %v1831
      %v1833 = vpop.f32.mrb[0].mxu0
      %1834 = vmatprep.mubr.f32.mxu0 0.0
      %1835 = vmatmul.mubr.f32.gmra.mrb[0].mxu0 %v1623
      %v1836 = vpop.f32.mrb[0].mxu0
      %v1837 = vadd.f32 0.0, %v1836
      %v1838 = vpop.f32.mrb[0].mxu0
      %1839 = vmatprep.mubr.f32.mxu0 0.0
      %1840 = vmatmul.mubr.f32.gmra.mrb[0].mxu0 %v1626
      %v1841 = vpop.f32.mrb[0].mxu0
      %v1842 = vadd.f32 0.0, %v1841
      %v1843 = vpop.f32.mrb[0].mxu0
      %1844 = vmatprep.mubr.f32.mxu0 0.0
      %1845 = vmatmul.mubr.f32.gmra.mrb[0].mxu0 %v1629
      %v1846 = vpop.f32.mrb[0].mxu0
      %v1847 = vadd.f32 0.0, %v1846
      %v1848 = vpop.f32.mrb[0].mxu0
      %1849 = vmatprep.mubr.f32.mxu0 0.0
      %1850 = vmatmul.mubr.f32.gmra.mrb[0].mxu0 %v1632
      %v1851 = vpop.f32.mrb[0].mxu0
      %v1852 = vadd.f32 0.0, %v1851
      %v1853 = vpop.f32.mrb[0].mxu0
      %1854 = vmatprep.mubr.f32.mxu0 0.0
      %1855 = vmatmul.mubr.f32.gmra.mrb[0].mxu0 %v1635
      %v1856 = vpop.f32.mrb[0].mxu0
      %v1857 = vadd.f32 0.0, %v1856
      %v1858 = vpop.f32.mrb[0].mxu0
      %1859 = vmatprep.mubr.f32.mxu0 0.0
      %1860 = vmatmul.mubr.f32.gmra.mrb[0].mxu0 %v1638
      %v1861 = vpop.f32.mrb[0].mxu0
      %v1862 = vadd.f32 0.0, %v1861
      %v1863 = vpop.f32.mrb[0].mxu0
      %1864 = vmatprep.mubr.f32.mxu0 0.0
      %1865 = vmatmul.mubr.f32.gmra.mrb[0].mxu0 %v1641
      %v1866 = vpop.f32.mrb[0].mxu0
      %v1867 = vadd.f32 0.0, %v1866
      %v1868 = vpop.f32.mrb[0].mxu0
      %1869 = vmatprep.mubr.f32.mxu0 0.0
      %1870 = vmatmul.mubr.f32.gmra.mrb[0].mxu0 %v1644
      %v1871 = vpop.f32.mrb[0].mxu0
      %v1872 = vadd.f32 0.0, %v1871
      %v1873 = vpop.f32.mrb[0].mxu0
      %1874 = vdwg.mxu0
      %v1875 = vld [vmem:[%s5] sm:$0x1]
      %v1877 = vlaneseq
      %v1878 = vshrl.u32 %v1877, 7
      %v1879 = vsub.s32 0, %v1878
      %v1880 = vrot.slane %v1875, %v1879
      %v1882 = vadd.f32 %v1717, %v1880
      %v1883 = vadd.f32 %v1722, %v1880
      %v1884 = vadd.f32 %v1727, %v1880
      %v1885 = vadd.f32 %v1732, %v1880
      %v1886 = vadd.f32 %v1737, %v1880
      %v1887 = vadd.f32 %v1742, %v1880
      %v1888 = vadd.f32 %v1747, %v1880
      %v1889 = vadd.f32 %v1752, %v1880
      %v1890 = vadd.f32 %v1757, %v1880
      %v1891 = vadd.f32 %v1762, %v1880
      %v1892 = vadd.f32 %v1767, %v1880
      %v1893 = vadd.f32 %v1772, %v1880
      %v1894 = vadd.f32 %v1777, %v1880
      %v1895 = vadd.f32 %v1782, %v1880
      %v1896 = vadd.f32 %v1787, %v1880
      %v1897 = vadd.f32 %v1792, %v1880
      %v1898 = vadd.f32 %v1797, %v1880
      %v1899 = vadd.f32 %v1802, %v1880
      %v1900 = vadd.f32 %v1807, %v1880
      %v1901 = vadd.f32 %v1812, %v1880
      %v1902 = vadd.f32 %v1817, %v1880
      %v1903 = vadd.f32 %v1822, %v1880
      %v1904 = vadd.f32 %v1827, %v1880
      %v1905 = vadd.f32 %v1832, %v1880
      %v1906 = vadd.f32 %v1837, %v1880
      %v1907 = vadd.f32 %v1842, %v1880
      %v1908 = vadd.f32 %v1847, %v1880
      %v1909 = vadd.f32 %v1852, %v1880
      %v1910 = vadd.f32 %v1857, %v1880
      %v1911 = vadd.f32 %v1862, %v1880
      %v1912 = vadd.f32 %v1867, %v1880
      %v1913 = vadd.f32 %v1872, %v1880
      %v1914 = vadd.f32 %v1882, %v746
      %v1915 = vadd.f32 %v1883, %v747
      %v1916 = vadd.f32 %v1884, %v748
      %v1917 = vadd.f32 %v1885, %v749
      %v1918 = vadd.f32 %v1886, %v750
      %v1919 = vadd.f32 %v1887, %v751
      %v1920 = vadd.f32 %v1888, %v752
      %v1921 = vadd.f32 %v1889, %v753
      %v1922 = vadd.f32 %v1890, %v754
      %v1923 = vadd.f32 %v1891, %v755
      %v1924 = vadd.f32 %v1892, %v756
      %v1925 = vadd.f32 %v1893, %v757
      %v1926 = vadd.f32 %v1894, %v758
      %v1927 = vadd.f32 %v1895, %v759
      %v1928 = vadd.f32 %v1896, %v760
      %v1929 = vadd.f32 %v1897, %v761
      %v1930 = vadd.f32 %v1898, %v762
      %v1931 = vadd.f32 %v1899, %v763
      %v1932 = vadd.f32 %v1900, %v764
      %v1933 = vadd.f32 %v1901, %v765
      %v1934 = vadd.f32 %v1902, %v766
      %v1935 = vadd.f32 %v1903, %v767
      %v1936 = vadd.f32 %v1904, %v768
      %v1937 = vadd.f32 %v1905, %v769
      %v1938 = vadd.f32 %v1906, %v770
      %v1939 = vadd.f32 %v1907, %v771
      %v1940 = vadd.f32 %v1908, %v772
      %v1941 = vadd.f32 %v1909, %v773
      %v1942 = vadd.f32 %v1910, %v774
      %v1943 = vadd.f32 %v1911, %v775
      %v1944 = vadd.f32 %v1912, %v776
      %v1945 = vadd.f32 %v1913, %v777
      %v1946 = vmax.f32 %v1914, 0.0
      %v1947 = vmax.f32 %v1915, 0.0
      %v1948 = vmax.f32 %v1916, 0.0
      %v1949 = vmax.f32 %v1917, 0.0
      %v1950 = vmax.f32 %v1918, 0.0
      %v1951 = vmax.f32 %v1919, 0.0
      %v1952 = vmax.f32 %v1920, 0.0
      %v1953 = vmax.f32 %v1921, 0.0
      %v1954 = vmax.f32 %v1922, 0.0
      %v1955 = vmax.f32 %v1923, 0.0
      %v1956 = vmax.f32 %v1924, 0.0
      %v1957 = vmax.f32 %v1925, 0.0
      %v1958 = vmax.f32 %v1926, 0.0
      %v1959 = vmax.f32 %v1927, 0.0
      %v1960 = vmax.f32 %v1928, 0.0
      %v1961 = vmax.f32 %v1929, 0.0
      %v1962 = vmax.f32 %v1930, 0.0
      %v1963 = vmax.f32 %v1931, 0.0
      %v1964 = vmax.f32 %v1932, 0.0
      %v1965 = vmax.f32 %v1933, 0.0
      %v1966 = vmax.f32 %v1934, 0.0
      %v1967 = vmax.f32 %v1935, 0.0
      %v1968 = vmax.f32 %v1936, 0.0
      %v1969 = vmax.f32 %v1937, 0.0
      %v1970 = vmax.f32 %v1938, 0.0
      %v1971 = vmax.f32 %v1939, 0.0
      %v1972 = vmax.f32 %v1940, 0.0
      %v1973 = vmax.f32 %v1941, 0.0
      %v1974 = vmax.f32 %v1942, 0.0
      %v1975 = vmax.f32 %v1943, 0.0
      %v1976 = vmax.f32 %v1944, 0.0
      %v1977 = vmax.f32 %v1945, 0.0
      %1978 = vst.msk [vmem:[%s418] sm:$0xff] %vm453, %v1946
      %1979 = vst.msk [vmem:[%s418 + $0x8] sm:$0xff] %vm453, %v1947
      %1980 = vst.msk [vmem:[%s418 + $0x10] sm:$0xff] %vm453, %v1948
      %1981 = vst.msk [vmem:[%s418 + $0x18] sm:$0xff] %vm453, %v1949
      %1982 = vst.msk [vmem:[%s418 + $0x20] sm:$0xff] %vm453, %v1950
      %1983 = vst.msk [vmem:[%s418 + $0x28] sm:$0xff] %vm453, %v1951
      %1984 = vst.msk [vmem:[%s418 + $0x30] sm:$0xff] %vm453, %v1952
      %1985 = vst.msk [vmem:[%s418 + $0x38] sm:$0xff] %vm453, %v1953
      %1986 = vst.msk [vmem:[%s418 + $0x40] sm:$0xff] %vm453, %v1954
      %1987 = vst.msk [vmem:[%s418 + $0x48] sm:$0xff] %vm453, %v1955
      %1988 = vst.msk [vmem:[%s418 + $0x50] sm:$0xff] %vm453, %v1956
      %1989 = vst.msk [vmem:[%s418 + $0x58] sm:$0xff] %vm453, %v1957
      %1990 = vst.msk [vmem:[%s418 + $0x60] sm:$0xff] %vm453, %v1958
      %1991 = vst.msk [vmem:[%s418 + $0x68] sm:$0xff] %vm453, %v1959
      %1992 = vst.msk [vmem:[%s418 + $0x70] sm:$0xff] %vm453, %v1960
      %1993 = vst.msk [vmem:[%s418 + $0x78] sm:$0xff] %vm453, %v1961
      %1994 = vst.msk [vmem:[%s418 + $0x80] sm:$0xff] %vm453, %v1962
      %1995 = vst.msk [vmem:[%s418 + $0x88] sm:$0xff] %vm453, %v1963
      %1996 = vst.msk [vmem:[%s418 + $0x90] sm:$0xff] %vm453, %v1964
      %1997 = vst.msk [vmem:[%s418 + $0x98] sm:$0xff] %vm453, %v1965
      %1998 = vst.msk [vmem:[%s418 + $0xa0] sm:$0xff] %vm453, %v1966
      %1999 = vst.msk [vmem:[%s418 + $0xa8] sm:$0xff] %vm453, %v1967
      %2000 = vst.msk [vmem:[%s418 + $0xb0] sm:$0xff] %vm453, %v1968
      %2001 = vst.msk [vmem:[%s418 + $0xb8] sm:$0xff] %vm453, %v1969
      %2002 = vst.msk [vmem:[%s418 + $0xc0] sm:$0xff] %vm453, %v1970
      %2003 = vst.msk [vmem:[%s418 + $0xc8] sm:$0xff] %vm453, %v1971
      %2004 = vst.msk [vmem:[%s418 + $0xd0] sm:$0xff] %vm453, %v1972
      %2005 = vst.msk [vmem:[%s418 + $0xd8] sm:$0xff] %vm453, %v1973
      %2006 = vst.msk [vmem:[%s418 + $0xe0] sm:$0xff] %vm453, %v1974
      %2007 = vst.msk [vmem:[%s418 + $0xe8] sm:$0xff] %vm453, %v1975
      %2008 = vst.msk [vmem:[%s418 + $0xf0] sm:$0xff] %vm453, %v1976
      %2009 = vst.msk [vmem:[%s418 + $0xf8] sm:$0xff] %vm453, %v1977
      %s2010 = smul.u32 16, %s22
      %p2011 = scmp.lt.s32.totalorder %s21, 1
      %s2012 = scalar_select %p2011, %s21, 1
      %p2013 = scmp.lt.s32.totalorder %s2010, 15
      %s2014 = scalar_select %p2013, %s2010, 15
      %s2015 = smul.addr %s2014, 2
      %s2016 = smul.addr %s2012, 32
      %s2017 = sadd.s32 %s2015, %s2016
      %s2018 = smul.addr %s2017, 8
      %s2019 = scalar_lea.vmem %s6, %s2018
      // Predicated region
      $region45: #{tpu_custom_call.1} parent=43 // pred_check
        %p2020 = pneg %p212
      $region46: #{tpu_custom_call.1} parent=43 // pred_check_branch
        %2022 = sbr.rel (%p2020) target = $region48
      $region47: #{tpu_custom_call.1} parent=43 // pred_region
        %s2023 = smul.u32 16, %s22
      $region48: #{tpu_custom_call.1} parent=43 // pred_fallthru
        _
    $region44: #{tpu_custom_call.1} parent=5 // pred_fallthru
      _
    %p2024 = scmp.le.s32.totalorder 2, %s12
    // Predicated region
    $region49: #{tpu_custom_call.1} parent=5 // pred_check
      %p2025 = pneg %p2024
    $region50: #{tpu_custom_call.1} parent=5 // pred_check_branch
      %2027 = sbr.rel (%p2025) target = $region52
    $region51: #{tpu_custom_call.1} parent=5 // pred_region
      %s2028 = ssub.s32 %s12, 2
      // Predicated region
      $region53: #{tpu_custom_call.1} parent=51 // pred_check
        %p2029 = pneg %p218
      $region54: #{tpu_custom_call.1} parent=51 // pred_check_branch
        %2031 = sbr.rel (%p2029) target = $region56
      $region55: #{tpu_custom_call.1} parent=51 // pred_region
        %s2032 = smul.u32 16, %s24
        %p2033 = scmp.lt.s32.totalorder %s23, 1
        %s2034 = scalar_select %p2033, %s23, 1
        %p2035 = scmp.lt.s32.totalorder %s2032, 15
        %s2036 = scalar_select %p2035, %s2032, 15
        %s2037 = smul.addr %s2036, 2
        %s2038 = smul.addr %s2034, 32
        %s2039 = sadd.s32 %s2037, %s2038
        %s2040 = smul.addr %s2039, 8
        %s2041 = scalar_lea.vmem %s6, %s2040
      $region56: #{tpu_custom_call.1} parent=51 // pred_fallthru
        _
    $region52: #{tpu_custom_call.1} parent=5 // pred_fallthru
      _
  $region6: #{tpu_custom_call.1} parent=0 // loop_footer
    %s16 = sadd.s32 1, %s12
  $region7: #{tpu_custom_call.1} parent=0 // loop_footer_branch
    %11 = sbr.rel target = $region3
  $region8: #{tpu_custom_call.1} parent=0 // loop_exit
    _

</llo_original>
